<compile_context>
chip_gen: v7x
topology: tpu7x:2x2x1
jax: 0.10.0
libtpu: 0.0.40
codegen_flags: <defaults>
</compile_context>

<pallas_src>
import jax
import jax.numpy as jnp
from jax.experimental import pallas as pl
from jax.experimental.pallas import tpu as pltpu


def _round_up(x: int, m: int) -> int:
    return ((x + m - 1) // m) * m


def _box_embed_kernel(x_ref, w_ref, b_ref, o_ref):
    # x_ref: (TN, K=F*4)  f32 folded rows; cast to bf16 in-kernel (free VPU op).
    # w_ref: (K, F*H_pad) bf16 block-diagonal weight, resident across the grid.
    # b_ref: (1, F*H_pad) f32 bias tiled F times.
    # o_ref: (TN, F*H_pad) lane-dense output (F*H_pad is a multiple of 128).
    x = x_ref[...].astype(jnp.bfloat16)
    y = jnp.dot(x, w_ref[...], preferred_element_type=jnp.float32)
    o_ref[...] = jnp.maximum(y + b_ref[...], 0.0).astype(o_ref.dtype)


def _pick_fold_factor() -> int:
    """F=32 (K=128) on 128-wide-MXU generations, F=64 (K=256) on v6e/v7x."""
    try:
        kind = jax.devices()[0].device_kind.lower()
    except Exception:
        return 64
    if any(t in kind for t in ("v5e", "v5 lite", "v5lite", "v4", "v3", "v2")):
        return 32
    return 64


class JAADFeatureExtractorPallas:
    """out = ReLU(box_input @ W + b) with W: (4, H), b: (H,)."""

    def __init__(self, weight, bias, *, fold=None, tn_target=1024,
                 min_rows_for_pallas=None):
        assert weight.shape[0] == 4 and bias.shape[0] == weight.shape[1]
        self.H = int(weight.shape[1])
        self.F = int(fold) if fold is not None else _pick_fold_factor()
        self.K = 4 * self.F
        self.tn_target = int(tn_target)
        # Pallas only pays off once the pipeline has several steps to overlap.
        self.min_rows_for_pallas = (int(min_rows_for_pallas)
                                    if min_rows_for_pallas is not None
                                    else 4 * self.tn_target * self.F)

        # Pad H so the folded lane width F*H_pad is a multiple of 128
        # (no-op for H = 32 at F = 32 or 64).
        lane_unit = max(1, 128 // self.F)
        self.H_pad = _round_up(self.H, lane_unit)
        self.HF = self.F * self.H_pad

        # Originals for the fused-XLA fallback path.
        self.weight = weight.astype(jnp.float32)
        self.bias = bias.astype(jnp.float32)

        # Call-invariant folded parameters, built ONCE here (hoisted out of the
        # per-call path per perf review).  bf16 weight -> single-pass MXU and
        # half the resident-weight VMEM/DMA.
        w = self.weight
        b = self.bias
        if self.H_pad > self.H:
            w = jnp.pad(w, ((0, 0), (0, self.H_pad - self.H)))
            b = jnp.pad(b, (0, self.H_pad - self.H))
        self.w_bd = jnp.kron(jnp.eye(self.F, dtype=jnp.float32), w).astype(jnp.bfloat16)
        self.b_f = jnp.tile(b, self.F).reshape(1, self.HF)

    def _choose_tile(self, nf: int, min_steps: int = 8) -> int:
        if nf >= min_steps * self.tn_target:
            return self.tn_target
        # Small problems (only reachable via force_pallas): shrink the tile so
        # the grid still has several steps -> BlockSpec double-buffering overlaps
        # DMA/compute and v7x can shard the parallel axis over its 2 TensorCores.
        tn = _round_up(max(1, pl.cdiv(nf, min_steps)), 8)
        return min(tn, self.tn_target)

    def __call__(self, box_input, *, force_pallas=False):
        B, T, D = box_input.shape
        assert D == 4
        N = B * T

        if not force_pallas and N < self.min_rows_for_pallas:
            # Tiny/medium sizes: launch + DMA overhead dominates -> let XLA fuse.
            return jnp.maximum(
                jnp.einsum("btd,dh->bth", box_input, self.weight) + self.bias, 0.0)

        F, K, HF, H, H_pad = self.F, self.K, self.HF, self.H, self.H_pad

        # Pad rows only to a multiple of 8*F (caps dead rows at 8*F - 1).
        N_pad = _round_up(N, 8 * F)
        Nf = N_pad // F                      # multiple of 8
        x2d = box_input.reshape(N, 4)
        if N_pad > N:
            x2d = jnp.pad(x2d, ((0, N_pad - N), (0, 0)))
        xf = x2d.reshape(Nf, K)

        TN = self._choose_tile(Nf)
        grid = (pl.cdiv(Nf, TN),)            # ragged last tile OK: the contraction
                                             # is row-local, OOB writes are dropped.

        out_f = pl.pallas_call(
            _box_embed_kernel,
            out_shape=jax.ShapeDtypeStruct((Nf, HF), box_input.dtype),
            grid=grid,
            in_specs=[
                pl.BlockSpec((TN, K), lambda i: (i, 0)),
                pl.BlockSpec((K, HF), lambda i: (0, 0)),   # resident; DMA'd once
                pl.BlockSpec((1, HF), lambda i: (0, 0)),   # resident bias
            ],
            out_specs=pl.BlockSpec((TN, HF), lambda i: (i, 0)),
            compiler_params=pltpu.CompilerParams(
                dimension_semantics=("parallel",)),
        )(xf, self.w_bd, self.b_f)

        out2d = out_f.reshape(N_pad, H_pad)  # free row-major reindex
        if N_pad != N or H_pad != H:
            out2d = out2d[:N, :H]            # only when padding was unavoidable
        return out2d.reshape(B, T, H)


def _reference(box_input, weight, bias):
    return jnp.maximum(jnp.einsum("btd,dh->bth", box_input, weight) + bias, 0.0)


if __name__ == "__main__":
    # args.hidden_size -> embedding size H
    B, T, H = 2, 8, 32

    key = jax.random.PRNGKey(0)
    kx, kw, kb, kx2 = jax.random.split(key, 4)

    # Deterministic synthetic Linear(4, H) parameters.
    weight = jax.random.normal(kw, (4, H), dtype=jnp.float32) * 0.5
    bias = jax.random.normal(kb, (H,), dtype=jnp.float32) * 0.1

    extractor = JAADFeatureExtractorPallas(weight, bias)

    # Check 1: tiny shape, forced Pallas path (production dispatch would route
    # this to the fused XLA path).
    box_input = jax.random.normal(kx, (B, T, 4), dtype=jnp.float32)
    out = jax.block_until_ready(extractor(box_input, force_pallas=True))
    ref = _reference(box_input, weight, bias)
    assert out.shape == (B, T, H)
    # bf16 MXU operands (same truncation XLA applies to f32 matmuls by default).
    assert jnp.allclose(out, ref, atol=5e-2, rtol=5e-2)

    # Check 2: multi-step grid + row padding + post-kernel slice path.
    B2, T2 = 41, 16                          # N = 656 -> padded to a multiple of 8*F
    box2 = jax.random.normal(kx2, (B2, T2, 4), dtype=jnp.float32)
    out2 = jax.block_until_ready(extractor(box2, force_pallas=True))
    ref2 = _reference(box2, weight, bias)
    assert out2.shape == (B2, T2, H)
    assert jnp.allclose(out2, ref2, atol=5e-2, rtol=5e-2)

    print("KERNEL_OK")
</pallas_src>

<mosaic_0001>
module attributes {stable_mosaic.version = 11 : i64} {
  func.func @_box_embed_kernel(%arg0: i32, %arg1: memref<8x256xf32, #tpu.memory_space<vmem>>, %arg2: memref<256x2048xbf16, #tpu.memory_space<vmem>>, %arg3: memref<1x2048xf32, #tpu.memory_space<vmem>>, %arg4: memref<8x2048xf32, #tpu.memory_space<vmem>>) attributes {dimension_semantics = [#tpu.dimension_semantics<parallel>], iteration_bounds = array<i64: 1>, scalar_prefetch = 0 : i64, scratch_operands = 0 : i64, tpu.core_type = #tpu.core_type<tc>, window_params = [{transform_indices = @transform_0, window_bounds = array<i64: 8, 256>}, {pipeline_mode = #tpu.pipeline_mode<synchronous>, transform_indices = @transform_1, window_bounds = array<i64: 256, 2048>}, {pipeline_mode = #tpu.pipeline_mode<synchronous>, transform_indices = @transform_2, window_bounds = array<i64: 1, 2048>}, {transform_indices = @transform_3, window_bounds = array<i64: 8, 2048>}]} {
    %c0 = arith.constant 0 : index
    %c0_0 = arith.constant 0 : index
    %0 = vector.load %arg1[%c0, %c0_0] : memref<8x256xf32, #tpu.memory_space<vmem>>, vector<8x256xf32>
    %1 = arith.truncf %0 : vector<8x256xf32> to vector<8x256xbf16>
    %c0_1 = arith.constant 0 : index
    %c0_2 = arith.constant 0 : index
    %2 = vector.load %arg2[%c0_1, %c0_2] : memref<256x2048xbf16, #tpu.memory_space<vmem>>, vector<256x2048xbf16>
    %cst = arith.constant dense<0.000000e+00> : vector<8x2048xf32>
    %3 = tpu.matmul %1, %2, %cst {dimension_numbers = #tpu.dot_dimension_numbers<[1], [0], [0], [1], [0, 0, 1, 1], [], []>} : vector<8x256xbf16>, vector<256x2048xbf16>, vector<8x2048xf32> -> vector<8x2048xf32>
    %c0_3 = arith.constant 0 : index
    %c0_4 = arith.constant 0 : index
    %4 = vector.load %arg3[%c0_3, %c0_4] : memref<1x2048xf32, #tpu.memory_space<vmem>>, vector<1x2048xf32>
    %5 = vector.broadcast %4 : vector<1x2048xf32> to vector<8x2048xf32>
    %6 = arith.addf %3, %5 : vector<8x2048xf32>
    %cst_5 = arith.constant 0.000000e+00 : f32
    %7 = vector.broadcast %cst_5 : f32 to vector<8x2048xf32>
    %8 = arith.maximumf %6, %7 : vector<8x2048xf32>
    %c0_6 = arith.constant 0 : index
    %c0_7 = arith.constant 0 : index
    %9 = vector.load %arg4[%c0_6, %c0_7] : memref<8x2048xf32, #tpu.memory_space<vmem>>, vector<8x2048xf32>
    tpu.vector_store %arg4[%c0_6, %c0_7], %8 {strides = array<i32>} : memref<8x2048xf32, #tpu.memory_space<vmem>>, vector<8x2048xf32>,
    return
  }
  func.func @transform_0(%arg0: i32) -> (i32, i32) {
    %c0_i32 = arith.constant 0 : i32
    %c0_i32_0 = arith.constant 0 : i32
    return %arg0, %c0_i32 : i32, i32
  }
  func.func @transform_1(%arg0: i32) -> (i32, i32) {
    %c0_i32 = arith.constant 0 : i32
    %c0_i32_0 = arith.constant 0 : i32
    %c0_i32_1 = arith.constant 0 : i32
    return %c0_i32, %c0_i32_0 : i32, i32
  }
  func.func @transform_2(%arg0: i32) -> (i32, i32) {
    %c0_i32 = arith.constant 0 : i32
    %c0_i32_0 = arith.constant 0 : i32
    %c0_i32_1 = arith.constant 0 : i32
    return %c0_i32, %c0_i32_0 : i32, i32
  }
  func.func @transform_3(%arg0: i32) -> (i32, i32) {
    %c0_i32 = arith.constant 0 : i32
    %c0_i32_0 = arith.constant 0 : i32
    return %arg0, %c0_i32 : i32, i32
  }
}

</mosaic_0001>

<llo_original>
// kernel: tpu_custom_call.1
$region0: #{tpu_custom_call.1}
  #allocation0 [shape = 'u32[]', space=smem, size = 0x4, offset = 0x4, fixed_abs, tag = 'smem constant byte address 0x4 - core index']
  #allocation1 [shape = 'u32[144,128]{1,0:T(1,128)}', space=vmem, size = 0x12000, scoped, tag = 'internal scratch']
  %s0 = inlined_call_operand.hbm [shape: f32[8,256], index: 0, kind: input, shape index: {}]
  %s1 = inlined_call_operand.hbm [shape: bf16[256,2048], index: 1, kind: input, shape index: {}]
  %s2 = inlined_call_operand.hbm [shape: f32[1,2048], index: 2, kind: input, shape index: {}]
  %s3 = inlined_call_operand.hbm [shape: f32[8,2048], index: 3, kind: output, shape index: {}]
  %s4 = sld [smem:[#allocation0]]
  $region34: #{tpu_custom_call.1} parent=0
    _
  %s6 = ssub.s32 1, %s4
  %s7 = scalar_select 0, %s6, %s4
  $region1: #{tpu_custom_call.1} parent=0
    #allocation2 [shape = 'u8[8192]{0}', space=vmem, size = 0x2000, scoped, tag = 'input window, operand 0, single buffered']
    #allocation3 [shape = 's32[1]{0}', space=sflag, size = 0x4, scoped, tag = 'scoped memory for tpu_custom_call.1']
    #allocation4 [shape = 's32[1]{0}', space=sflag, size = 0x4, scoped, tag = 'scoped memory for tpu_custom_call.1']
    #allocation5 [shape = 'u8[1048576]{0}', space=vmem, size = 0x100000, scoped, tag = 'input window, operand 1, single buffered']
    #allocation6 [shape = 's32[1]{0}', space=sflag, size = 0x4, scoped, tag = 'scoped memory for tpu_custom_call.1']
    #allocation7 [shape = 'u8[8192]{0}', space=vmem, size = 0x2000, scoped, tag = 'input window, operand 2, single buffered']
    #allocation8 [shape = 'u8[65536]{0}', space=vmem, size = 0x10000, scoped, tag = 'output window, operand 0, single buffered']
    %8 = vsyncpa [#allocation3], 0
    %9 = vsyncpa [#allocation6], 0
    %10 = vsyncpa [#allocation4], 0
    // Predicated region
    $region2: #{tpu_custom_call.1} parent=1 // pred_check
      _
    $region3: #{tpu_custom_call.1} parent=1 // pred_check_branch
      %12 = sbr.rel (0) target = $region5
    $region4: #{tpu_custom_call.1} parent=1 // pred_region
      %s14 = ssub.s32 256, 256
      %15 = vsyncadd [#allocation3], %s14
      %s17 = sshll.u32 [#allocation2], 4
      %s18 = int_to_ptr.vmem [resolvable:$true] %s17
      %20 = dma.hbm_to_vmem [thread:$0]  %s0, 256, %s18, [#allocation3]
    $region5: #{tpu_custom_call.1} parent=1 // pred_fallthru
      _
    // Predicated region
    $region6: #{tpu_custom_call.1} parent=1 // pred_check
      _
    $region7: #{tpu_custom_call.1} parent=1 // pred_check_branch
      %22 = sbr.rel (0) target = $region9
    $region8: #{tpu_custom_call.1} parent=1 // pred_region
      %s24 = ssub.s32 32768, 32768
      %25 = vsyncadd [#allocation6], %s24
      %s26 = sshll.u32 [#allocation5], 4
      %s27 = int_to_ptr.vmem [resolvable:$true] %s26
      %32 = dma.hbm_to_vmem [thread:$0]  %s1, 32768, %s27, [#allocation6], 1024, 1024, 64
    $region9: #{tpu_custom_call.1} parent=1 // pred_fallthru
      _
    // Predicated region
    $region10: #{tpu_custom_call.1} parent=1 // pred_check
      _
    $region11: #{tpu_custom_call.1} parent=1 // pred_check_branch
      %34 = sbr.rel (0) target = $region13
    $region12: #{tpu_custom_call.1} parent=1 // pred_region
      %s36 = ssub.s32 256, 256
      %37 = vsyncadd [#allocation6], %s36
      %s39 = sshll.u32 [#allocation7], 4
      %s40 = int_to_ptr.vmem [resolvable:$true] %s39
      %42 = dma.hbm_to_vmem [thread:$0]  %s2, 256, %s40, [#allocation6]
    $region13: #{tpu_custom_call.1} parent=1 // pred_fallthru
      _
    // Predicated region
    $region14: #{tpu_custom_call.1} parent=1 // pred_check
      _
    $region15: #{tpu_custom_call.1} parent=1 // pred_check_branch
      %44 = sbr.rel (0) target = $region17
    $region16: #{tpu_custom_call.1} parent=1 // pred_region
      %45 = dma.done [#allocation3], 256
    $region17: #{tpu_custom_call.1} parent=1 // pred_fallthru
      _
    // Predicated region
    $region18: #{tpu_custom_call.1} parent=1 // pred_check
      _
    $region19: #{tpu_custom_call.1} parent=1 // pred_check_branch
      %47 = sbr.rel (0) target = $region21
    $region20: #{tpu_custom_call.1} parent=1 // pred_region
      %48 = dma.done [#allocation6], 32768
    $region21: #{tpu_custom_call.1} parent=1 // pred_fallthru
      _
    // Predicated region
    $region22: #{tpu_custom_call.1} parent=1 // pred_check
      _
    $region23: #{tpu_custom_call.1} parent=1 // pred_check_branch
      %50 = sbr.rel (0) target = $region25
    $region24: #{tpu_custom_call.1} parent=1 // pred_region
      %51 = dma.done [#allocation6], 256
    $region25: #{tpu_custom_call.1} parent=1 // pred_fallthru
      _
    %v52 = vld [vmem:[#allocation2] sm:$0xff]
    %v53 = vld [vmem:[#allocation2 + $0x8] sm:$0xff]
    %v54 = vpack.c.bf16 %v52, %v52
    %v55 = vpack.c.bf16 %v53, %v53
    %v56 = vld [vmem:[#allocation5] sm:$0xff]
    %v57 = vld [vmem:[#allocation5 + $0x8] sm:$0xff]
    %v58 = vld [vmem:[#allocation5 + $0x10] sm:$0xff]
    %v59 = vld [vmem:[#allocation5 + $0x18] sm:$0xff]
    %v60 = vld [vmem:[#allocation5 + $0x20] sm:$0xff]
    %v61 = vld [vmem:[#allocation5 + $0x28] sm:$0xff]
    %v62 = vld [vmem:[#allocation5 + $0x30] sm:$0xff]
    %v63 = vld [vmem:[#allocation5 + $0x38] sm:$0xff]
    %v64 = vld [vmem:[#allocation5 + $0x40] sm:$0xff]
    %v65 = vld [vmem:[#allocation5 + $0x48] sm:$0xff]
    %v66 = vld [vmem:[#allocation5 + $0x50] sm:$0xff]
    %v67 = vld [vmem:[#allocation5 + $0x58] sm:$0xff]
    %v68 = vld [vmem:[#allocation5 + $0x60] sm:$0xff]
    %v69 = vld [vmem:[#allocation5 + $0x68] sm:$0xff]
    %v70 = vld [vmem:[#allocation5 + $0x70] sm:$0xff]
    %v71 = vld [vmem:[#allocation5 + $0x78] sm:$0xff]
    %v72 = vld [vmem:[#allocation5 + $0x80] sm:$0xff]
    %v73 = vld [vmem:[#allocation5 + $0x88] sm:$0xff]
    %v74 = vld [vmem:[#allocation5 + $0x90] sm:$0xff]
    %v75 = vld [vmem:[#allocation5 + $0x98] sm:$0xff]
    %v76 = vld [vmem:[#allocation5 + $0xa0] sm:$0xff]
    %v77 = vld [vmem:[#allocation5 + $0xa8] sm:$0xff]
    %v78 = vld [vmem:[#allocation5 + $0xb0] sm:$0xff]
    %v79 = vld [vmem:[#allocation5 + $0xb8] sm:$0xff]
    %v80 = vld [vmem:[#allocation5 + $0xc0] sm:$0xff]
    %v81 = vld [vmem:[#allocation5 + $0xc8] sm:$0xff]
    %v82 = vld [vmem:[#allocation5 + $0xd0] sm:$0xff]
    %v83 = vld [vmem:[#allocation5 + $0xd8] sm:$0xff]
    %v84 = vld [vmem:[#allocation5 + $0xe0] sm:$0xff]
    %v85 = vld [vmem:[#allocation5 + $0xe8] sm:$0xff]
    %v86 = vld [vmem:[#allocation5 + $0xf0] sm:$0xff]
    %v87 = vld [vmem:[#allocation5 + $0xf8] sm:$0xff]
    %v88 = vld [vmem:[#allocation5 + $0x100] sm:$0xff]
    %v89 = vld [vmem:[#allocation5 + $0x108] sm:$0xff]
    %v90 = vld [vmem:[#allocation5 + $0x110] sm:$0xff]
    %v91 = vld [vmem:[#allocation5 + $0x118] sm:$0xff]
    %v92 = vld [vmem:[#allocation5 + $0x120] sm:$0xff]
    %v93 = vld [vmem:[#allocation5 + $0x128] sm:$0xff]
    %v94 = vld [vmem:[#allocation5 + $0x130] sm:$0xff]
    %v95 = vld [vmem:[#allocation5 + $0x138] sm:$0xff]
    %v96 = vld [vmem:[#allocation5 + $0x140] sm:$0xff]
    %v97 = vld [vmem:[#allocation5 + $0x148] sm:$0xff]
    %v98 = vld [vmem:[#allocation5 + $0x150] sm:$0xff]
    %v99 = vld [vmem:[#allocation5 + $0x158] sm:$0xff]
    %v100 = vld [vmem:[#allocation5 + $0x160] sm:$0xff]
    %v101 = vld [vmem:[#allocation5 + $0x168] sm:$0xff]
    %v102 = vld [vmem:[#allocation5 + $0x170] sm:$0xff]
    %v103 = vld [vmem:[#allocation5 + $0x178] sm:$0xff]
    %v104 = vld [vmem:[#allocation5 + $0x180] sm:$0xff]
    %v105 = vld [vmem:[#allocation5 + $0x188] sm:$0xff]
    %v106 = vld [vmem:[#allocation5 + $0x190] sm:$0xff]
    %v107 = vld [vmem:[#allocation5 + $0x198] sm:$0xff]
    %v108 = vld [vmem:[#allocation5 + $0x1a0] sm:$0xff]
    %v109 = vld [vmem:[#allocation5 + $0x1a8] sm:$0xff]
    %v110 = vld [vmem:[#allocation5 + $0x1b0] sm:$0xff]
    %v111 = vld [vmem:[#allocation5 + $0x1b8] sm:$0xff]
    %v112 = vld [vmem:[#allocation5 + $0x1c0] sm:$0xff]
    %v113 = vld [vmem:[#allocation5 + $0x1c8] sm:$0xff]
    %v114 = vld [vmem:[#allocation5 + $0x1d0] sm:$0xff]
    %v115 = vld [vmem:[#allocation5 + $0x1d8] sm:$0xff]
    %v116 = vld [vmem:[#allocation5 + $0x1e0] sm:$0xff]
    %v117 = vld [vmem:[#allocation5 + $0x1e8] sm:$0xff]
    %v118 = vld [vmem:[#allocation5 + $0x1f0] sm:$0xff]
    %v119 = vld [vmem:[#allocation5 + $0x1f8] sm:$0xff]
    %v120 = vld [vmem:[#allocation5 + $0x200] sm:$0xff]
    %v121 = vld [vmem:[#allocation5 + $0x208] sm:$0xff]
    %v122 = vld [vmem:[#allocation5 + $0x210] sm:$0xff]
    %v123 = vld [vmem:[#allocation5 + $0x218] sm:$0xff]
    %v124 = vld [vmem:[#allocation5 + $0x220] sm:$0xff]
    %v125 = vld [vmem:[#allocation5 + $0x228] sm:$0xff]
    %v126 = vld [vmem:[#allocation5 + $0x230] sm:$0xff]
    %v127 = vld [vmem:[#allocation5 + $0x238] sm:$0xff]
    %v128 = vld [vmem:[#allocation5 + $0x240] sm:$0xff]
    %v129 = vld [vmem:[#allocation5 + $0x248] sm:$0xff]
    %v130 = vld [vmem:[#allocation5 + $0x250] sm:$0xff]
    %v131 = vld [vmem:[#allocation5 + $0x258] sm:$0xff]
    %v132 = vld [vmem:[#allocation5 + $0x260] sm:$0xff]
    %v133 = vld [vmem:[#allocation5 + $0x268] sm:$0xff]
    %v134 = vld [vmem:[#allocation5 + $0x270] sm:$0xff]
    %v135 = vld [vmem:[#allocation5 + $0x278] sm:$0xff]
    %v136 = vld [vmem:[#allocation5 + $0x280] sm:$0xff]
    %v137 = vld [vmem:[#allocation5 + $0x288] sm:$0xff]
    %v138 = vld [vmem:[#allocation5 + $0x290] sm:$0xff]
    %v139 = vld [vmem:[#allocation5 + $0x298] sm:$0xff]
    %v140 = vld [vmem:[#allocation5 + $0x2a0] sm:$0xff]
    %v141 = vld [vmem:[#allocation5 + $0x2a8] sm:$0xff]
    %v142 = vld [vmem:[#allocation5 + $0x2b0] sm:$0xff]
    %v143 = vld [vmem:[#allocation5 + $0x2b8] sm:$0xff]
    %v144 = vld [vmem:[#allocation5 + $0x2c0] sm:$0xff]
    %v145 = vld [vmem:[#allocation5 + $0x2c8] sm:$0xff]
    %v146 = vld [vmem:[#allocation5 + $0x2d0] sm:$0xff]
    %v147 = vld [vmem:[#allocation5 + $0x2d8] sm:$0xff]
    %v148 = vld [vmem:[#allocation5 + $0x2e0] sm:$0xff]
    %v149 = vld [vmem:[#allocation5 + $0x2e8] sm:$0xff]
    %v150 = vld [vmem:[#allocation5 + $0x2f0] sm:$0xff]
    %v151 = vld [vmem:[#allocation5 + $0x2f8] sm:$0xff]
    %v152 = vld [vmem:[#allocation5 + $0x300] sm:$0xff]
    %v153 = vld [vmem:[#allocation5 + $0x308] sm:$0xff]
    %v154 = vld [vmem:[#allocation5 + $0x310] sm:$0xff]
    %v155 = vld [vmem:[#allocation5 + $0x318] sm:$0xff]
    %v156 = vld [vmem:[#allocation5 + $0x320] sm:$0xff]
    %v157 = vld [vmem:[#allocation5 + $0x328] sm:$0xff]
    %v158 = vld [vmem:[#allocation5 + $0x330] sm:$0xff]
    %v159 = vld [vmem:[#allocation5 + $0x338] sm:$0xff]
    %v160 = vld [vmem:[#allocation5 + $0x340] sm:$0xff]
    %v161 = vld [vmem:[#allocation5 + $0x348] sm:$0xff]
    %v162 = vld [vmem:[#allocation5 + $0x350] sm:$0xff]
    %v163 = vld [vmem:[#allocation5 + $0x358] sm:$0xff]
    %v164 = vld [vmem:[#allocation5 + $0x360] sm:$0xff]
    %v165 = vld [vmem:[#allocation5 + $0x368] sm:$0xff]
    %v166 = vld [vmem:[#allocation5 + $0x370] sm:$0xff]
    %v167 = vld [vmem:[#allocation5 + $0x378] sm:$0xff]
    %v168 = vld [vmem:[#allocation5 + $0x380] sm:$0xff]
    %v169 = vld [vmem:[#allocation5 + $0x388] sm:$0xff]
    %v170 = vld [vmem:[#allocation5 + $0x390] sm:$0xff]
    %v171 = vld [vmem:[#allocation5 + $0x398] sm:$0xff]
    %v172 = vld [vmem:[#allocation5 + $0x3a0] sm:$0xff]
    %v173 = vld [vmem:[#allocation5 + $0x3a8] sm:$0xff]
    %v174 = vld [vmem:[#allocation5 + $0x3b0] sm:$0xff]
    %v175 = vld [vmem:[#allocation5 + $0x3b8] sm:$0xff]
    %v176 = vld [vmem:[#allocation5 + $0x3c0] sm:$0xff]
    %v177 = vld [vmem:[#allocation5 + $0x3c8] sm:$0xff]
    %v178 = vld [vmem:[#allocation5 + $0x3d0] sm:$0xff]
    %v179 = vld [vmem:[#allocation5 + $0x3d8] sm:$0xff]
    %v180 = vld [vmem:[#allocation5 + $0x3e0] sm:$0xff]
    %v181 = vld [vmem:[#allocation5 + $0x3e8] sm:$0xff]
    %v182 = vld [vmem:[#allocation5 + $0x3f0] sm:$0xff]
    %v183 = vld [vmem:[#allocation5 + $0x3f8] sm:$0xff]
    %v184 = vld [vmem:[#allocation5 + $0x400] sm:$0xff]
    %v185 = vld [vmem:[#allocation5 + $0x408] sm:$0xff]
    %v186 = vld [vmem:[#allocation5 + $0x410] sm:$0xff]
    %v187 = vld [vmem:[#allocation5 + $0x418] sm:$0xff]
    %v188 = vld [vmem:[#allocation5 + $0x420] sm:$0xff]
    %v189 = vld [vmem:[#allocation5 + $0x428] sm:$0xff]
    %v190 = vld [vmem:[#allocation5 + $0x430] sm:$0xff]
    %v191 = vld [vmem:[#allocation5 + $0x438] sm:$0xff]
    %v192 = vld [vmem:[#allocation5 + $0x440] sm:$0xff]
    %v193 = vld [vmem:[#allocation5 + $0x448] sm:$0xff]
    %v194 = vld [vmem:[#allocation5 + $0x450] sm:$0xff]
    %v195 = vld [vmem:[#allocation5 + $0x458] sm:$0xff]
    %v196 = vld [vmem:[#allocation5 + $0x460] sm:$0xff]
    %v197 = vld [vmem:[#allocation5 + $0x468] sm:$0xff]
    %v198 = vld [vmem:[#allocation5 + $0x470] sm:$0xff]
    %v199 = vld [vmem:[#allocation5 + $0x478] sm:$0xff]
    %v200 = vld [vmem:[#allocation5 + $0x480] sm:$0xff]
    %v201 = vld [vmem:[#allocation5 + $0x488] sm:$0xff]
    %v202 = vld [vmem:[#allocation5 + $0x490] sm:$0xff]
    %v203 = vld [vmem:[#allocation5 + $0x498] sm:$0xff]
    %v204 = vld [vmem:[#allocation5 + $0x4a0] sm:$0xff]
    %v205 = vld [vmem:[#allocation5 + $0x4a8] sm:$0xff]
    %v206 = vld [vmem:[#allocation5 + $0x4b0] sm:$0xff]
    %v207 = vld [vmem:[#allocation5 + $0x4b8] sm:$0xff]
    %v208 = vld [vmem:[#allocation5 + $0x4c0] sm:$0xff]
    %v209 = vld [vmem:[#allocation5 + $0x4c8] sm:$0xff]
    %v210 = vld [vmem:[#allocation5 + $0x4d0] sm:$0xff]
    %v211 = vld [vmem:[#allocation5 + $0x4d8] sm:$0xff]
    %v212 = vld [vmem:[#allocation5 + $0x4e0] sm:$0xff]
    %v213 = vld [vmem:[#allocation5 + $0x4e8] sm:$0xff]
    %v214 = vld [vmem:[#allocation5 + $0x4f0] sm:$0xff]
    %v215 = vld [vmem:[#allocation5 + $0x4f8] sm:$0xff]
    %v216 = vld [vmem:[#allocation5 + $0x500] sm:$0xff]
    %v217 = vld [vmem:[#allocation5 + $0x508] sm:$0xff]
    %v218 = vld [vmem:[#allocation5 + $0x510] sm:$0xff]
    %v219 = vld [vmem:[#allocation5 + $0x518] sm:$0xff]
    %v220 = vld [vmem:[#allocation5 + $0x520] sm:$0xff]
    %v221 = vld [vmem:[#allocation5 + $0x528] sm:$0xff]
    %v222 = vld [vmem:[#allocation5 + $0x530] sm:$0xff]
    %v223 = vld [vmem:[#allocation5 + $0x538] sm:$0xff]
    %v224 = vld [vmem:[#allocation5 + $0x540] sm:$0xff]
    %v225 = vld [vmem:[#allocation5 + $0x548] sm:$0xff]
    %v226 = vld [vmem:[#allocation5 + $0x550] sm:$0xff]
    %v227 = vld [vmem:[#allocation5 + $0x558] sm:$0xff]
    %v228 = vld [vmem:[#allocation5 + $0x560] sm:$0xff]
    %v229 = vld [vmem:[#allocation5 + $0x568] sm:$0xff]
    %v230 = vld [vmem:[#allocation5 + $0x570] sm:$0xff]
    %v231 = vld [vmem:[#allocation5 + $0x578] sm:$0xff]
    %v232 = vld [vmem:[#allocation5 + $0x580] sm:$0xff]
    %v233 = vld [vmem:[#allocation5 + $0x588] sm:$0xff]
    %v234 = vld [vmem:[#allocation5 + $0x590] sm:$0xff]
    %v235 = vld [vmem:[#allocation5 + $0x598] sm:$0xff]
    %v236 = vld [vmem:[#allocation5 + $0x5a0] sm:$0xff]
    %v237 = vld [vmem:[#allocation5 + $0x5a8] sm:$0xff]
    %v238 = vld [vmem:[#allocation5 + $0x5b0] sm:$0xff]
    %v239 = vld [vmem:[#allocation5 + $0x5b8] sm:$0xff]
    %v240 = vld [vmem:[#allocation5 + $0x5c0] sm:$0xff]
    %v241 = vld [vmem:[#allocation5 + $0x5c8] sm:$0xff]
    %v242 = vld [vmem:[#allocation5 + $0x5d0] sm:$0xff]
    %v243 = vld [vmem:[#allocation5 + $0x5d8] sm:$0xff]
    %v244 = vld [vmem:[#allocation5 + $0x5e0] sm:$0xff]
    %v245 = vld [vmem:[#allocation5 + $0x5e8] sm:$0xff]
    %v246 = vld [vmem:[#allocation5 + $0x5f0] sm:$0xff]
    %v247 = vld [vmem:[#allocation5 + $0x5f8] sm:$0xff]
    %v248 = vld [vmem:[#allocation5 + $0x600] sm:$0xff]
    %v249 = vld [vmem:[#allocation5 + $0x608] sm:$0xff]
    %v250 = vld [vmem:[#allocation5 + $0x610] sm:$0xff]
    %v251 = vld [vmem:[#allocation5 + $0x618] sm:$0xff]
    %v252 = vld [vmem:[#allocation5 + $0x620] sm:$0xff]
    %v253 = vld [vmem:[#allocation5 + $0x628] sm:$0xff]
    %v254 = vld [vmem:[#allocation5 + $0x630] sm:$0xff]
    %v255 = vld [vmem:[#allocation5 + $0x638] sm:$0xff]
    %v256 = vld [vmem:[#allocation5 + $0x640] sm:$0xff]
    %v257 = vld [vmem:[#allocation5 + $0x648] sm:$0xff]
    %v258 = vld [vmem:[#allocation5 + $0x650] sm:$0xff]
    %v259 = vld [vmem:[#allocation5 + $0x658] sm:$0xff]
    %v260 = vld [vmem:[#allocation5 + $0x660] sm:$0xff]
    %v261 = vld [vmem:[#allocation5 + $0x668] sm:$0xff]
    %v262 = vld [vmem:[#allocation5 + $0x670] sm:$0xff]
    %v263 = vld [vmem:[#allocation5 + $0x678] sm:$0xff]
    %v264 = vld [vmem:[#allocation5 + $0x680] sm:$0xff]
    %v265 = vld [vmem:[#allocation5 + $0x688] sm:$0xff]
    %v266 = vld [vmem:[#allocation5 + $0x690] sm:$0xff]
    %v267 = vld [vmem:[#allocation5 + $0x698] sm:$0xff]
    %v268 = vld [vmem:[#allocation5 + $0x6a0] sm:$0xff]
    %v269 = vld [vmem:[#allocation5 + $0x6a8] sm:$0xff]
    %v270 = vld [vmem:[#allocation5 + $0x6b0] sm:$0xff]
    %v271 = vld [vmem:[#allocation5 + $0x6b8] sm:$0xff]
    %v272 = vld [vmem:[#allocation5 + $0x6c0] sm:$0xff]
    %v273 = vld [vmem:[#allocation5 + $0x6c8] sm:$0xff]
    %v274 = vld [vmem:[#allocation5 + $0x6d0] sm:$0xff]
    %v275 = vld [vmem:[#allocation5 + $0x6d8] sm:$0xff]
    %v276 = vld [vmem:[#allocation5 + $0x6e0] sm:$0xff]
    %v277 = vld [vmem:[#allocation5 + $0x6e8] sm:$0xff]
    %v278 = vld [vmem:[#allocation5 + $0x6f0] sm:$0xff]
    %v279 = vld [vmem:[#allocation5 + $0x6f8] sm:$0xff]
    %v280 = vld [vmem:[#allocation5 + $0x700] sm:$0xff]
    %v281 = vld [vmem:[#allocation5 + $0x708] sm:$0xff]
    %v282 = vld [vmem:[#allocation5 + $0x710] sm:$0xff]
    %v283 = vld [vmem:[#allocation5 + $0x718] sm:$0xff]
    %v284 = vld [vmem:[#allocation5 + $0x720] sm:$0xff]
    %v285 = vld [vmem:[#allocation5 + $0x728] sm:$0xff]
    %v286 = vld [vmem:[#allocation5 + $0x730] sm:$0xff]
    %v287 = vld [vmem:[#allocation5 + $0x738] sm:$0xff]
    %v288 = vld [vmem:[#allocation5 + $0x740] sm:$0xff]
    %v289 = vld [vmem:[#allocation5 + $0x748] sm:$0xff]
    %v290 = vld [vmem:[#allocation5 + $0x750] sm:$0xff]
    %v291 = vld [vmem:[#allocation5 + $0x758] sm:$0xff]
    %v292 = vld [vmem:[#allocation5 + $0x760] sm:$0xff]
    %v293 = vld [vmem:[#allocation5 + $0x768] sm:$0xff]
    %v294 = vld [vmem:[#allocation5 + $0x770] sm:$0xff]
    %v295 = vld [vmem:[#allocation5 + $0x778] sm:$0xff]
    %v296 = vld [vmem:[#allocation5 + $0x780] sm:$0xff]
    %v297 = vld [vmem:[#allocation5 + $0x788] sm:$0xff]
    %v298 = vld [vmem:[#allocation5 + $0x790] sm:$0xff]
    %v299 = vld [vmem:[#allocation5 + $0x798] sm:$0xff]
    %v300 = vld [vmem:[#allocation5 + $0x7a0] sm:$0xff]
    %v301 = vld [vmem:[#allocation5 + $0x7a8] sm:$0xff]
    %v302 = vld [vmem:[#allocation5 + $0x7b0] sm:$0xff]
    %v303 = vld [vmem:[#allocation5 + $0x7b8] sm:$0xff]
    %v304 = vld [vmem:[#allocation5 + $0x7c0] sm:$0xff]
    %v305 = vld [vmem:[#allocation5 + $0x7c8] sm:$0xff]
    %v306 = vld [vmem:[#allocation5 + $0x7d0] sm:$0xff]
    %v307 = vld [vmem:[#allocation5 + $0x7d8] sm:$0xff]
    %v308 = vld [vmem:[#allocation5 + $0x7e0] sm:$0xff]
    %v309 = vld [vmem:[#allocation5 + $0x7e8] sm:$0xff]
    %v310 = vld [vmem:[#allocation5 + $0x7f0] sm:$0xff]
    %v311 = vld [vmem:[#allocation5 + $0x7f8] sm:$0xff]
    %v312 = vld [vmem:[#allocation7] sm:$0xff]
    %v313 = vld [vmem:[#allocation7 + $0x8] sm:$0xff]
    %v316 = vlaneseq
    %v317 = vshrl.u32 %v316, 7
    %v318 = vsub.s32 0, %v317
    %v319 = vrot.slane %v312, %v318
    %v320 = vlaneseq
    %v321 = vshrl.u32 %v320, 7
    %v322 = vsub.s32 1, %v321
    %v323 = vrot.slane %v312, %v322
    %v324 = vlaneseq
    %v325 = vshrl.u32 %v324, 7
    %v326 = vsub.s32 2, %v325
    %v327 = vrot.slane %v312, %v326
    %v328 = vlaneseq
    %v329 = vshrl.u32 %v328, 7
    %v330 = vsub.s32 3, %v329
    %v331 = vrot.slane %v312, %v330
    %v332 = vlaneseq
    %v333 = vshrl.u32 %v332, 7
    %v334 = vsub.s32 4, %v333
    %v335 = vrot.slane %v312, %v334
    %v336 = vlaneseq
    %v337 = vshrl.u32 %v336, 7
    %v338 = vsub.s32 5, %v337
    %v339 = vrot.slane %v312, %v338
    %v340 = vlaneseq
    %v341 = vshrl.u32 %v340, 7
    %v342 = vsub.s32 6, %v341
    %v343 = vrot.slane %v312, %v342
    %v344 = vlaneseq
    %v345 = vshrl.u32 %v344, 7
    %v346 = vsub.s32 7, %v345
    %v347 = vrot.slane %v312, %v346
    %v348 = vlaneseq
    %v349 = vshrl.u32 %v348, 7
    %v350 = vsub.s32 0, %v349
    %v351 = vrot.slane %v313, %v350
    %v352 = vlaneseq
    %v353 = vshrl.u32 %v352, 7
    %v354 = vsub.s32 1, %v353
    %v355 = vrot.slane %v313, %v354
    %v356 = vlaneseq
    %v357 = vshrl.u32 %v356, 7
    %v358 = vsub.s32 2, %v357
    %v359 = vrot.slane %v313, %v358
    %v360 = vlaneseq
    %v361 = vshrl.u32 %v360, 7
    %v362 = vsub.s32 3, %v361
    %v363 = vrot.slane %v313, %v362
    %v364 = vlaneseq
    %v365 = vshrl.u32 %v364, 7
    %v366 = vsub.s32 4, %v365
    %v367 = vrot.slane %v313, %v366
    %v368 = vlaneseq
    %v369 = vshrl.u32 %v368, 7
    %v370 = vsub.s32 5, %v369
    %v371 = vrot.slane %v313, %v370
    %v372 = vlaneseq
    %v373 = vshrl.u32 %v372, 7
    %v374 = vsub.s32 6, %v373
    %v375 = vrot.slane %v313, %v374
    %v376 = vlaneseq
    %v377 = vshrl.u32 %v376, 7
    %v378 = vsub.s32 7, %v377
    %v379 = vrot.slane %v313, %v378
    %v652 = vunpack.c.l.b16 %v56
    %v653 = vunpack.c.h.b16 %v56
    %v654 = vunpack.c.l.b16 %v57
    %v655 = vunpack.c.h.b16 %v57
    %v656 = vunpack.c.l.b16 %v58
    %v657 = vunpack.c.h.b16 %v58
    %v658 = vunpack.c.l.b16 %v59
    %v659 = vunpack.c.h.b16 %v59
    %v660 = vunpack.c.l.b16 %v60
    %v661 = vunpack.c.h.b16 %v60
    %v662 = vunpack.c.l.b16 %v61
    %v663 = vunpack.c.h.b16 %v61
    %v664 = vunpack.c.l.b16 %v62
    %v665 = vunpack.c.h.b16 %v62
    %v666 = vunpack.c.l.b16 %v63
    %v667 = vunpack.c.h.b16 %v63
    %v668 = vunpack.c.l.b16 %v64
    %v669 = vunpack.c.h.b16 %v64
    %v670 = vunpack.c.l.b16 %v65
    %v671 = vunpack.c.h.b16 %v65
    %v672 = vunpack.c.l.b16 %v66
    %v673 = vunpack.c.h.b16 %v66
    %v674 = vunpack.c.l.b16 %v67
    %v675 = vunpack.c.h.b16 %v67
    %v676 = vunpack.c.l.b16 %v68
    %v677 = vunpack.c.h.b16 %v68
    %v678 = vunpack.c.l.b16 %v69
    %v679 = vunpack.c.h.b16 %v69
    %v680 = vunpack.c.l.b16 %v70
    %v681 = vunpack.c.h.b16 %v70
    %v682 = vunpack.c.l.b16 %v71
    %v683 = vunpack.c.h.b16 %v71
    %v684 = vunpack.c.l.b16 %v72
    %v685 = vunpack.c.h.b16 %v72
    %v686 = vunpack.c.l.b16 %v73
    %v687 = vunpack.c.h.b16 %v73
    %v688 = vunpack.c.l.b16 %v74
    %v689 = vunpack.c.h.b16 %v74
    %v690 = vunpack.c.l.b16 %v75
    %v691 = vunpack.c.h.b16 %v75
    %v692 = vunpack.c.l.b16 %v76
    %v693 = vunpack.c.h.b16 %v76
    %v694 = vunpack.c.l.b16 %v77
    %v695 = vunpack.c.h.b16 %v77
    %v696 = vunpack.c.l.b16 %v78
    %v697 = vunpack.c.h.b16 %v78
    %v698 = vunpack.c.l.b16 %v79
    %v699 = vunpack.c.h.b16 %v79
    %v700 = vunpack.c.l.b16 %v80
    %v701 = vunpack.c.h.b16 %v80
    %v702 = vunpack.c.l.b16 %v81
    %v703 = vunpack.c.h.b16 %v81
    %v704 = vunpack.c.l.b16 %v82
    %v705 = vunpack.c.h.b16 %v82
    %v706 = vunpack.c.l.b16 %v83
    %v707 = vunpack.c.h.b16 %v83
    %v708 = vunpack.c.l.b16 %v84
    %v709 = vunpack.c.h.b16 %v84
    %v710 = vunpack.c.l.b16 %v85
    %v711 = vunpack.c.h.b16 %v85
    %v712 = vunpack.c.l.b16 %v86
    %v713 = vunpack.c.h.b16 %v86
    %v714 = vunpack.c.l.b16 %v87
    %v715 = vunpack.c.h.b16 %v87
    %v716 = vunpack.c.l.b16 %v88
    %v717 = vunpack.c.h.b16 %v88
    %v718 = vunpack.c.l.b16 %v89
    %v719 = vunpack.c.h.b16 %v89
    %v720 = vunpack.c.l.b16 %v90
    %v721 = vunpack.c.h.b16 %v90
    %v722 = vunpack.c.l.b16 %v91
    %v723 = vunpack.c.h.b16 %v91
    %v724 = vunpack.c.l.b16 %v92
    %v725 = vunpack.c.h.b16 %v92
    %v726 = vunpack.c.l.b16 %v93
    %v727 = vunpack.c.h.b16 %v93
    %v728 = vunpack.c.l.b16 %v94
    %v729 = vunpack.c.h.b16 %v94
    %v730 = vunpack.c.l.b16 %v95
    %v731 = vunpack.c.h.b16 %v95
    %v732 = vunpack.c.l.b16 %v96
    %v733 = vunpack.c.h.b16 %v96
    %v734 = vunpack.c.l.b16 %v97
    %v735 = vunpack.c.h.b16 %v97
    %v736 = vunpack.c.l.b16 %v98
    %v737 = vunpack.c.h.b16 %v98
    %v738 = vunpack.c.l.b16 %v99
    %v739 = vunpack.c.h.b16 %v99
    %v740 = vunpack.c.l.b16 %v100
    %v741 = vunpack.c.h.b16 %v100
    %v742 = vunpack.c.l.b16 %v101
    %v743 = vunpack.c.h.b16 %v101
    %v744 = vunpack.c.l.b16 %v102
    %v745 = vunpack.c.h.b16 %v102
    %v746 = vunpack.c.l.b16 %v103
    %v747 = vunpack.c.h.b16 %v103
    %v748 = vunpack.c.l.b16 %v104
    %v749 = vunpack.c.h.b16 %v104
    %v750 = vunpack.c.l.b16 %v105
    %v751 = vunpack.c.h.b16 %v105
    %v752 = vunpack.c.l.b16 %v106
    %v753 = vunpack.c.h.b16 %v106
    %v754 = vunpack.c.l.b16 %v107
    %v755 = vunpack.c.h.b16 %v107
    %v756 = vunpack.c.l.b16 %v108
    %v757 = vunpack.c.h.b16 %v108
    %v758 = vunpack.c.l.b16 %v109
    %v759 = vunpack.c.h.b16 %v109
    %v760 = vunpack.c.l.b16 %v110
    %v761 = vunpack.c.h.b16 %v110
    %v762 = vunpack.c.l.b16 %v111
    %v763 = vunpack.c.h.b16 %v111
    %v764 = vunpack.c.l.b16 %v112
    %v765 = vunpack.c.h.b16 %v112
    %v766 = vunpack.c.l.b16 %v113
    %v767 = vunpack.c.h.b16 %v113
    %v768 = vunpack.c.l.b16 %v114
    %v769 = vunpack.c.h.b16 %v114
    %v770 = vunpack.c.l.b16 %v115
    %v771 = vunpack.c.h.b16 %v115
    %v772 = vunpack.c.l.b16 %v116
    %v773 = vunpack.c.h.b16 %v116
    %v774 = vunpack.c.l.b16 %v117
    %v775 = vunpack.c.h.b16 %v117
    %v776 = vunpack.c.l.b16 %v118
    %v777 = vunpack.c.h.b16 %v118
    %v778 = vunpack.c.l.b16 %v119
    %v779 = vunpack.c.h.b16 %v119
    %v780 = vunpack.c.l.b16 %v120
    %v781 = vunpack.c.h.b16 %v120
    %v782 = vunpack.c.l.b16 %v121
    %v783 = vunpack.c.h.b16 %v121
    %v784 = vunpack.c.l.b16 %v122
    %v785 = vunpack.c.h.b16 %v122
    %v786 = vunpack.c.l.b16 %v123
    %v787 = vunpack.c.h.b16 %v123
    %v788 = vunpack.c.l.b16 %v124
    %v789 = vunpack.c.h.b16 %v124
    %v790 = vunpack.c.l.b16 %v125
    %v791 = vunpack.c.h.b16 %v125
    %v792 = vunpack.c.l.b16 %v126
    %v793 = vunpack.c.h.b16 %v126
    %v794 = vunpack.c.l.b16 %v127
    %v795 = vunpack.c.h.b16 %v127
    %v796 = vunpack.c.l.b16 %v128
    %v797 = vunpack.c.h.b16 %v128
    %v798 = vunpack.c.l.b16 %v129
    %v799 = vunpack.c.h.b16 %v129
    %v800 = vunpack.c.l.b16 %v130
    %v801 = vunpack.c.h.b16 %v130
    %v802 = vunpack.c.l.b16 %v131
    %v803 = vunpack.c.h.b16 %v131
    %v804 = vunpack.c.l.b16 %v132
    %v805 = vunpack.c.h.b16 %v132
    %v806 = vunpack.c.l.b16 %v133
    %v807 = vunpack.c.h.b16 %v133
    %v808 = vunpack.c.l.b16 %v134
    %v809 = vunpack.c.h.b16 %v134
    %v810 = vunpack.c.l.b16 %v135
    %v811 = vunpack.c.h.b16 %v135
    %v812 = vunpack.c.l.b16 %v136
    %v813 = vunpack.c.h.b16 %v136
    %v814 = vunpack.c.l.b16 %v137
    %v815 = vunpack.c.h.b16 %v137
    %v816 = vunpack.c.l.b16 %v138
    %v817 = vunpack.c.h.b16 %v138
    %v818 = vunpack.c.l.b16 %v139
    %v819 = vunpack.c.h.b16 %v139
    %v820 = vunpack.c.l.b16 %v140
    %v821 = vunpack.c.h.b16 %v140
    %v822 = vunpack.c.l.b16 %v141
    %v823 = vunpack.c.h.b16 %v141
    %v824 = vunpack.c.l.b16 %v142
    %v825 = vunpack.c.h.b16 %v142
    %v826 = vunpack.c.l.b16 %v143
    %v827 = vunpack.c.h.b16 %v143
    %v828 = vunpack.c.l.b16 %v144
    %v829 = vunpack.c.h.b16 %v144
    %v830 = vunpack.c.l.b16 %v145
    %v831 = vunpack.c.h.b16 %v145
    %v832 = vunpack.c.l.b16 %v146
    %v833 = vunpack.c.h.b16 %v146
    %v834 = vunpack.c.l.b16 %v147
    %v835 = vunpack.c.h.b16 %v147
    %v836 = vunpack.c.l.b16 %v148
    %v837 = vunpack.c.h.b16 %v148
    %v838 = vunpack.c.l.b16 %v149
    %v839 = vunpack.c.h.b16 %v149
    %v840 = vunpack.c.l.b16 %v150
    %v841 = vunpack.c.h.b16 %v150
    %v842 = vunpack.c.l.b16 %v151
    %v843 = vunpack.c.h.b16 %v151
    %v844 = vunpack.c.l.b16 %v152
    %v845 = vunpack.c.h.b16 %v152
    %v846 = vunpack.c.l.b16 %v153
    %v847 = vunpack.c.h.b16 %v153
    %v848 = vunpack.c.l.b16 %v154
    %v849 = vunpack.c.h.b16 %v154
    %v850 = vunpack.c.l.b16 %v155
    %v851 = vunpack.c.h.b16 %v155
    %v852 = vunpack.c.l.b16 %v156
    %v853 = vunpack.c.h.b16 %v156
    %v854 = vunpack.c.l.b16 %v157
    %v855 = vunpack.c.h.b16 %v157
    %v856 = vunpack.c.l.b16 %v158
    %v857 = vunpack.c.h.b16 %v158
    %v858 = vunpack.c.l.b16 %v159
    %v859 = vunpack.c.h.b16 %v159
    %v860 = vunpack.c.l.b16 %v160
    %v861 = vunpack.c.h.b16 %v160
    %v862 = vunpack.c.l.b16 %v161
    %v863 = vunpack.c.h.b16 %v161
    %v864 = vunpack.c.l.b16 %v162
    %v865 = vunpack.c.h.b16 %v162
    %v866 = vunpack.c.l.b16 %v163
    %v867 = vunpack.c.h.b16 %v163
    %v868 = vunpack.c.l.b16 %v164
    %v869 = vunpack.c.h.b16 %v164
    %v870 = vunpack.c.l.b16 %v165
    %v871 = vunpack.c.h.b16 %v165
    %v872 = vunpack.c.l.b16 %v166
    %v873 = vunpack.c.h.b16 %v166
    %v874 = vunpack.c.l.b16 %v167
    %v875 = vunpack.c.h.b16 %v167
    %v876 = vunpack.c.l.b16 %v168
    %v877 = vunpack.c.h.b16 %v168
    %v878 = vunpack.c.l.b16 %v169
    %v879 = vunpack.c.h.b16 %v169
    %v880 = vunpack.c.l.b16 %v170
    %v881 = vunpack.c.h.b16 %v170
    %v882 = vunpack.c.l.b16 %v171
    %v883 = vunpack.c.h.b16 %v171
    %v884 = vunpack.c.l.b16 %v172
    %v885 = vunpack.c.h.b16 %v172
    %v886 = vunpack.c.l.b16 %v173
    %v887 = vunpack.c.h.b16 %v173
    %v888 = vunpack.c.l.b16 %v174
    %v889 = vunpack.c.h.b16 %v174
    %v890 = vunpack.c.l.b16 %v175
    %v891 = vunpack.c.h.b16 %v175
    %v892 = vunpack.c.l.b16 %v176
    %v893 = vunpack.c.h.b16 %v176
    %v894 = vunpack.c.l.b16 %v177
    %v895 = vunpack.c.h.b16 %v177
    %v896 = vunpack.c.l.b16 %v178
    %v897 = vunpack.c.h.b16 %v178
    %v898 = vunpack.c.l.b16 %v179
    %v899 = vunpack.c.h.b16 %v179
    %v900 = vunpack.c.l.b16 %v180
    %v901 = vunpack.c.h.b16 %v180
    %v902 = vunpack.c.l.b16 %v181
    %v903 = vunpack.c.h.b16 %v181
    %v904 = vunpack.c.l.b16 %v182
    %v905 = vunpack.c.h.b16 %v182
    %v906 = vunpack.c.l.b16 %v183
    %v907 = vunpack.c.h.b16 %v183
    %v908 = vunpack.c.l.b16 %v184
    %v909 = vunpack.c.h.b16 %v184
    %v910 = vunpack.c.l.b16 %v185
    %v911 = vunpack.c.h.b16 %v185
    %v912 = vunpack.c.l.b16 %v186
    %v913 = vunpack.c.h.b16 %v186
    %v914 = vunpack.c.l.b16 %v187
    %v915 = vunpack.c.h.b16 %v187
    %v916 = vunpack.c.l.b16 %v188
    %v917 = vunpack.c.h.b16 %v188
    %v918 = vunpack.c.l.b16 %v189
    %v919 = vunpack.c.h.b16 %v189
    %v920 = vunpack.c.l.b16 %v190
    %v921 = vunpack.c.h.b16 %v190
    %v922 = vunpack.c.l.b16 %v191
    %v923 = vunpack.c.h.b16 %v191
    %v924 = vunpack.c.l.b16 %v192
    %v925 = vunpack.c.h.b16 %v192
    %v926 = vunpack.c.l.b16 %v193
    %v927 = vunpack.c.h.b16 %v193
    %v928 = vunpack.c.l.b16 %v194
    %v929 = vunpack.c.h.b16 %v194
    %v930 = vunpack.c.l.b16 %v195
    %v931 = vunpack.c.h.b16 %v195
    %v932 = vunpack.c.l.b16 %v196
    %v933 = vunpack.c.h.b16 %v196
    %v934 = vunpack.c.l.b16 %v197
    %v935 = vunpack.c.h.b16 %v197
    %v936 = vunpack.c.l.b16 %v198
    %v937 = vunpack.c.h.b16 %v198
    %v938 = vunpack.c.l.b16 %v199
    %v939 = vunpack.c.h.b16 %v199
    %v940 = vunpack.c.l.b16 %v200
    %v941 = vunpack.c.h.b16 %v200
    %v942 = vunpack.c.l.b16 %v201
    %v943 = vunpack.c.h.b16 %v201
    %v944 = vunpack.c.l.b16 %v202
    %v945 = vunpack.c.h.b16 %v202
    %v946 = vunpack.c.l.b16 %v203
    %v947 = vunpack.c.h.b16 %v203
    %v948 = vunpack.c.l.b16 %v204
    %v949 = vunpack.c.h.b16 %v204
    %v950 = vunpack.c.l.b16 %v205
    %v951 = vunpack.c.h.b16 %v205
    %v952 = vunpack.c.l.b16 %v206
    %v953 = vunpack.c.h.b16 %v206
    %v954 = vunpack.c.l.b16 %v207
    %v955 = vunpack.c.h.b16 %v207
    %v956 = vunpack.c.l.b16 %v208
    %v957 = vunpack.c.h.b16 %v208
    %v958 = vunpack.c.l.b16 %v209
    %v959 = vunpack.c.h.b16 %v209
    %v960 = vunpack.c.l.b16 %v210
    %v961 = vunpack.c.h.b16 %v210
    %v962 = vunpack.c.l.b16 %v211
    %v963 = vunpack.c.h.b16 %v211
    %v964 = vunpack.c.l.b16 %v212
    %v965 = vunpack.c.h.b16 %v212
    %v966 = vunpack.c.l.b16 %v213
    %v967 = vunpack.c.h.b16 %v213
    %v968 = vunpack.c.l.b16 %v214
    %v969 = vunpack.c.h.b16 %v214
    %v970 = vunpack.c.l.b16 %v215
    %v971 = vunpack.c.h.b16 %v215
    %v972 = vunpack.c.l.b16 %v216
    %v973 = vunpack.c.h.b16 %v216
    %v974 = vunpack.c.l.b16 %v217
    %v975 = vunpack.c.h.b16 %v217
    %v976 = vunpack.c.l.b16 %v218
    %v977 = vunpack.c.h.b16 %v218
    %v978 = vunpack.c.l.b16 %v219
    %v979 = vunpack.c.h.b16 %v219
    %v980 = vunpack.c.l.b16 %v220
    %v981 = vunpack.c.h.b16 %v220
    %v982 = vunpack.c.l.b16 %v221
    %v983 = vunpack.c.h.b16 %v221
    %v984 = vunpack.c.l.b16 %v222
    %v985 = vunpack.c.h.b16 %v222
    %v986 = vunpack.c.l.b16 %v223
    %v987 = vunpack.c.h.b16 %v223
    %v988 = vunpack.c.l.b16 %v224
    %v989 = vunpack.c.h.b16 %v224
    %v990 = vunpack.c.l.b16 %v225
    %v991 = vunpack.c.h.b16 %v225
    %v992 = vunpack.c.l.b16 %v226
    %v993 = vunpack.c.h.b16 %v226
    %v994 = vunpack.c.l.b16 %v227
    %v995 = vunpack.c.h.b16 %v227
    %v996 = vunpack.c.l.b16 %v228
    %v997 = vunpack.c.h.b16 %v228
    %v998 = vunpack.c.l.b16 %v229
    %v999 = vunpack.c.h.b16 %v229
    %v1000 = vunpack.c.l.b16 %v230
    %v1001 = vunpack.c.h.b16 %v230
    %v1002 = vunpack.c.l.b16 %v231
    %v1003 = vunpack.c.h.b16 %v231
    %v1004 = vunpack.c.l.b16 %v232
    %v1005 = vunpack.c.h.b16 %v232
    %v1006 = vunpack.c.l.b16 %v233
    %v1007 = vunpack.c.h.b16 %v233
    %v1008 = vunpack.c.l.b16 %v234
    %v1009 = vunpack.c.h.b16 %v234
    %v1010 = vunpack.c.l.b16 %v235
    %v1011 = vunpack.c.h.b16 %v235
    %v1012 = vunpack.c.l.b16 %v236
    %v1013 = vunpack.c.h.b16 %v236
    %v1014 = vunpack.c.l.b16 %v237
    %v1015 = vunpack.c.h.b16 %v237
    %v1016 = vunpack.c.l.b16 %v238
    %v1017 = vunpack.c.h.b16 %v238
    %v1018 = vunpack.c.l.b16 %v239
    %v1019 = vunpack.c.h.b16 %v239
    %v1020 = vunpack.c.l.b16 %v240
    %v1021 = vunpack.c.h.b16 %v240
    %v1022 = vunpack.c.l.b16 %v241
    %v1023 = vunpack.c.h.b16 %v241
    %v1024 = vunpack.c.l.b16 %v242
    %v1025 = vunpack.c.h.b16 %v242
    %v1026 = vunpack.c.l.b16 %v243
    %v1027 = vunpack.c.h.b16 %v243
    %v1028 = vunpack.c.l.b16 %v244
    %v1029 = vunpack.c.h.b16 %v244
    %v1030 = vunpack.c.l.b16 %v245
    %v1031 = vunpack.c.h.b16 %v245
    %v1032 = vunpack.c.l.b16 %v246
    %v1033 = vunpack.c.h.b16 %v246
    %v1034 = vunpack.c.l.b16 %v247
    %v1035 = vunpack.c.h.b16 %v247
    %v1036 = vunpack.c.l.b16 %v248
    %v1037 = vunpack.c.h.b16 %v248
    %v1038 = vunpack.c.l.b16 %v249
    %v1039 = vunpack.c.h.b16 %v249
    %v1040 = vunpack.c.l.b16 %v250
    %v1041 = vunpack.c.h.b16 %v250
    %v1042 = vunpack.c.l.b16 %v251
    %v1043 = vunpack.c.h.b16 %v251
    %v1044 = vunpack.c.l.b16 %v252
    %v1045 = vunpack.c.h.b16 %v252
    %v1046 = vunpack.c.l.b16 %v253
    %v1047 = vunpack.c.h.b16 %v253
    %v1048 = vunpack.c.l.b16 %v254
    %v1049 = vunpack.c.h.b16 %v254
    %v1050 = vunpack.c.l.b16 %v255
    %v1051 = vunpack.c.h.b16 %v255
    %v1052 = vunpack.c.l.b16 %v256
    %v1053 = vunpack.c.h.b16 %v256
    %v1054 = vunpack.c.l.b16 %v257
    %v1055 = vunpack.c.h.b16 %v257
    %v1056 = vunpack.c.l.b16 %v258
    %v1057 = vunpack.c.h.b16 %v258
    %v1058 = vunpack.c.l.b16 %v259
    %v1059 = vunpack.c.h.b16 %v259
    %v1060 = vunpack.c.l.b16 %v260
    %v1061 = vunpack.c.h.b16 %v260
    %v1062 = vunpack.c.l.b16 %v261
    %v1063 = vunpack.c.h.b16 %v261
    %v1064 = vunpack.c.l.b16 %v262
    %v1065 = vunpack.c.h.b16 %v262
    %v1066 = vunpack.c.l.b16 %v263
    %v1067 = vunpack.c.h.b16 %v263
    %v1068 = vunpack.c.l.b16 %v264
    %v1069 = vunpack.c.h.b16 %v264
    %v1070 = vunpack.c.l.b16 %v265
    %v1071 = vunpack.c.h.b16 %v265
    %v1072 = vunpack.c.l.b16 %v266
    %v1073 = vunpack.c.h.b16 %v266
    %v1074 = vunpack.c.l.b16 %v267
    %v1075 = vunpack.c.h.b16 %v267
    %v1076 = vunpack.c.l.b16 %v268
    %v1077 = vunpack.c.h.b16 %v268
    %v1078 = vunpack.c.l.b16 %v269
    %v1079 = vunpack.c.h.b16 %v269
    %v1080 = vunpack.c.l.b16 %v270
    %v1081 = vunpack.c.h.b16 %v270
    %v1082 = vunpack.c.l.b16 %v271
    %v1083 = vunpack.c.h.b16 %v271
    %v1084 = vunpack.c.l.b16 %v272
    %v1085 = vunpack.c.h.b16 %v272
    %v1086 = vunpack.c.l.b16 %v273
    %v1087 = vunpack.c.h.b16 %v273
    %v1088 = vunpack.c.l.b16 %v274
    %v1089 = vunpack.c.h.b16 %v274
    %v1090 = vunpack.c.l.b16 %v275
    %v1091 = vunpack.c.h.b16 %v275
    %v1092 = vunpack.c.l.b16 %v276
    %v1093 = vunpack.c.h.b16 %v276
    %v1094 = vunpack.c.l.b16 %v277
    %v1095 = vunpack.c.h.b16 %v277
    %v1096 = vunpack.c.l.b16 %v278
    %v1097 = vunpack.c.h.b16 %v278
    %v1098 = vunpack.c.l.b16 %v279
    %v1099 = vunpack.c.h.b16 %v279
    %v1100 = vunpack.c.l.b16 %v280
    %v1101 = vunpack.c.h.b16 %v280
    %v1102 = vunpack.c.l.b16 %v281
    %v1103 = vunpack.c.h.b16 %v281
    %v1104 = vunpack.c.l.b16 %v282
    %v1105 = vunpack.c.h.b16 %v282
    %v1106 = vunpack.c.l.b16 %v283
    %v1107 = vunpack.c.h.b16 %v283
    %v1108 = vunpack.c.l.b16 %v284
    %v1109 = vunpack.c.h.b16 %v284
    %v1110 = vunpack.c.l.b16 %v285
    %v1111 = vunpack.c.h.b16 %v285
    %v1112 = vunpack.c.l.b16 %v286
    %v1113 = vunpack.c.h.b16 %v286
    %v1114 = vunpack.c.l.b16 %v287
    %v1115 = vunpack.c.h.b16 %v287
    %v1116 = vunpack.c.l.b16 %v288
    %v1117 = vunpack.c.h.b16 %v288
    %v1118 = vunpack.c.l.b16 %v289
    %v1119 = vunpack.c.h.b16 %v289
    %v1120 = vunpack.c.l.b16 %v290
    %v1121 = vunpack.c.h.b16 %v290
    %v1122 = vunpack.c.l.b16 %v291
    %v1123 = vunpack.c.h.b16 %v291
    %v1124 = vunpack.c.l.b16 %v292
    %v1125 = vunpack.c.h.b16 %v292
    %v1126 = vunpack.c.l.b16 %v293
    %v1127 = vunpack.c.h.b16 %v293
    %v1128 = vunpack.c.l.b16 %v294
    %v1129 = vunpack.c.h.b16 %v294
    %v1130 = vunpack.c.l.b16 %v295
    %v1131 = vunpack.c.h.b16 %v295
    %v1132 = vunpack.c.l.b16 %v296
    %v1133 = vunpack.c.h.b16 %v296
    %v1134 = vunpack.c.l.b16 %v297
    %v1135 = vunpack.c.h.b16 %v297
    %v1136 = vunpack.c.l.b16 %v298
    %v1137 = vunpack.c.h.b16 %v298
    %v1138 = vunpack.c.l.b16 %v299
    %v1139 = vunpack.c.h.b16 %v299
    %v1140 = vunpack.c.l.b16 %v300
    %v1141 = vunpack.c.h.b16 %v300
    %v1142 = vunpack.c.l.b16 %v301
    %v1143 = vunpack.c.h.b16 %v301
    %v1144 = vunpack.c.l.b16 %v302
    %v1145 = vunpack.c.h.b16 %v302
    %v1146 = vunpack.c.l.b16 %v303
    %v1147 = vunpack.c.h.b16 %v303
    %v1148 = vunpack.c.l.b16 %v304
    %v1149 = vunpack.c.h.b16 %v304
    %v1150 = vunpack.c.l.b16 %v305
    %v1151 = vunpack.c.h.b16 %v305
    %v1152 = vunpack.c.l.b16 %v306
    %v1153 = vunpack.c.h.b16 %v306
    %v1154 = vunpack.c.l.b16 %v307
    %v1155 = vunpack.c.h.b16 %v307
    %v1156 = vunpack.c.l.b16 %v308
    %v1157 = vunpack.c.h.b16 %v308
    %v1158 = vunpack.c.l.b16 %v309
    %v1159 = vunpack.c.h.b16 %v309
    %v1160 = vunpack.c.l.b16 %v310
    %v1161 = vunpack.c.h.b16 %v310
    %v1162 = vunpack.c.l.b16 %v311
    %v1163 = vunpack.c.h.b16 %v311
    %v1164 = vpack.c.b16 %v668, %v652
    %v1165 = vpack.c.b16 %v669, %v653
    %v1166 = vpack.c.b16 %v670, %v654
    %v1167 = vpack.c.b16 %v671, %v655
    %v1168 = vpack.c.b16 %v672, %v656
    %v1169 = vpack.c.b16 %v673, %v657
    %v1170 = vpack.c.b16 %v674, %v658
    %v1171 = vpack.c.b16 %v675, %v659
    %v1172 = vpack.c.b16 %v676, %v660
    %v1173 = vpack.c.b16 %v677, %v661
    %v1174 = vpack.c.b16 %v678, %v662
    %v1175 = vpack.c.b16 %v679, %v663
    %v1176 = vpack.c.b16 %v680, %v664
    %v1177 = vpack.c.b16 %v681, %v665
    %v1178 = vpack.c.b16 %v682, %v666
    %v1179 = vpack.c.b16 %v683, %v667
    %v1180 = vpack.c.b16 %v700, %v684
    %v1181 = vpack.c.b16 %v701, %v685
    %v1182 = vpack.c.b16 %v702, %v686
    %v1183 = vpack.c.b16 %v703, %v687
    %v1184 = vpack.c.b16 %v704, %v688
    %v1185 = vpack.c.b16 %v705, %v689
    %v1186 = vpack.c.b16 %v706, %v690
    %v1187 = vpack.c.b16 %v707, %v691
    %v1188 = vpack.c.b16 %v708, %v692
    %v1189 = vpack.c.b16 %v709, %v693
    %v1190 = vpack.c.b16 %v710, %v694
    %v1191 = vpack.c.b16 %v711, %v695
    %v1192 = vpack.c.b16 %v712, %v696
    %v1193 = vpack.c.b16 %v713, %v697
    %v1194 = vpack.c.b16 %v714, %v698
    %v1195 = vpack.c.b16 %v715, %v699
    %v1196 = vpack.c.b16 %v732, %v716
    %v1197 = vpack.c.b16 %v733, %v717
    %v1198 = vpack.c.b16 %v734, %v718
    %v1199 = vpack.c.b16 %v735, %v719
    %v1200 = vpack.c.b16 %v736, %v720
    %v1201 = vpack.c.b16 %v737, %v721
    %v1202 = vpack.c.b16 %v738, %v722
    %v1203 = vpack.c.b16 %v739, %v723
    %v1204 = vpack.c.b16 %v740, %v724
    %v1205 = vpack.c.b16 %v741, %v725
    %v1206 = vpack.c.b16 %v742, %v726
    %v1207 = vpack.c.b16 %v743, %v727
    %v1208 = vpack.c.b16 %v744, %v728
    %v1209 = vpack.c.b16 %v745, %v729
    %v1210 = vpack.c.b16 %v746, %v730
    %v1211 = vpack.c.b16 %v747, %v731
    %v1212 = vpack.c.b16 %v764, %v748
    %v1213 = vpack.c.b16 %v765, %v749
    %v1214 = vpack.c.b16 %v766, %v750
    %v1215 = vpack.c.b16 %v767, %v751
    %v1216 = vpack.c.b16 %v768, %v752
    %v1217 = vpack.c.b16 %v769, %v753
    %v1218 = vpack.c.b16 %v770, %v754
    %v1219 = vpack.c.b16 %v771, %v755
    %v1220 = vpack.c.b16 %v772, %v756
    %v1221 = vpack.c.b16 %v773, %v757
    %v1222 = vpack.c.b16 %v774, %v758
    %v1223 = vpack.c.b16 %v775, %v759
    %v1224 = vpack.c.b16 %v776, %v760
    %v1225 = vpack.c.b16 %v777, %v761
    %v1226 = vpack.c.b16 %v778, %v762
    %v1227 = vpack.c.b16 %v779, %v763
    %v1228 = vpack.c.b16 %v796, %v780
    %v1229 = vpack.c.b16 %v797, %v781
    %v1230 = vpack.c.b16 %v798, %v782
    %v1231 = vpack.c.b16 %v799, %v783
    %v1232 = vpack.c.b16 %v800, %v784
    %v1233 = vpack.c.b16 %v801, %v785
    %v1234 = vpack.c.b16 %v802, %v786
    %v1235 = vpack.c.b16 %v803, %v787
    %v1236 = vpack.c.b16 %v804, %v788
    %v1237 = vpack.c.b16 %v805, %v789
    %v1238 = vpack.c.b16 %v806, %v790
    %v1239 = vpack.c.b16 %v807, %v791
    %v1240 = vpack.c.b16 %v808, %v792
    %v1241 = vpack.c.b16 %v809, %v793
    %v1242 = vpack.c.b16 %v810, %v794
    %v1243 = vpack.c.b16 %v811, %v795
    %v1244 = vpack.c.b16 %v828, %v812
    %v1245 = vpack.c.b16 %v829, %v813
    %v1246 = vpack.c.b16 %v830, %v814
    %v1247 = vpack.c.b16 %v831, %v815
    %v1248 = vpack.c.b16 %v832, %v816
    %v1249 = vpack.c.b16 %v833, %v817
    %v1250 = vpack.c.b16 %v834, %v818
    %v1251 = vpack.c.b16 %v835, %v819
    %v1252 = vpack.c.b16 %v836, %v820
    %v1253 = vpack.c.b16 %v837, %v821
    %v1254 = vpack.c.b16 %v838, %v822
    %v1255 = vpack.c.b16 %v839, %v823
    %v1256 = vpack.c.b16 %v840, %v824
    %v1257 = vpack.c.b16 %v841, %v825
    %v1258 = vpack.c.b16 %v842, %v826
    %v1259 = vpack.c.b16 %v843, %v827
    %v1260 = vpack.c.b16 %v860, %v844
    %v1261 = vpack.c.b16 %v861, %v845
    %v1262 = vpack.c.b16 %v862, %v846
    %v1263 = vpack.c.b16 %v863, %v847
    %v1264 = vpack.c.b16 %v864, %v848
    %v1265 = vpack.c.b16 %v865, %v849
    %v1266 = vpack.c.b16 %v866, %v850
    %v1267 = vpack.c.b16 %v867, %v851
    %v1268 = vpack.c.b16 %v868, %v852
    %v1269 = vpack.c.b16 %v869, %v853
    %v1270 = vpack.c.b16 %v870, %v854
    %v1271 = vpack.c.b16 %v871, %v855
    %v1272 = vpack.c.b16 %v872, %v856
    %v1273 = vpack.c.b16 %v873, %v857
    %v1274 = vpack.c.b16 %v874, %v858
    %v1275 = vpack.c.b16 %v875, %v859
    %v1276 = vpack.c.b16 %v892, %v876
    %v1277 = vpack.c.b16 %v893, %v877
    %v1278 = vpack.c.b16 %v894, %v878
    %v1279 = vpack.c.b16 %v895, %v879
    %v1280 = vpack.c.b16 %v896, %v880
    %v1281 = vpack.c.b16 %v897, %v881
    %v1282 = vpack.c.b16 %v898, %v882
    %v1283 = vpack.c.b16 %v899, %v883
    %v1284 = vpack.c.b16 %v900, %v884
    %v1285 = vpack.c.b16 %v901, %v885
    %v1286 = vpack.c.b16 %v902, %v886
    %v1287 = vpack.c.b16 %v903, %v887
    %v1288 = vpack.c.b16 %v904, %v888
    %v1289 = vpack.c.b16 %v905, %v889
    %v1290 = vpack.c.b16 %v906, %v890
    %v1291 = vpack.c.b16 %v907, %v891
    %v1292 = vpack.c.b16 %v924, %v908
    %v1293 = vpack.c.b16 %v925, %v909
    %v1294 = vpack.c.b16 %v926, %v910
    %v1295 = vpack.c.b16 %v927, %v911
    %v1296 = vpack.c.b16 %v928, %v912
    %v1297 = vpack.c.b16 %v929, %v913
    %v1298 = vpack.c.b16 %v930, %v914
    %v1299 = vpack.c.b16 %v931, %v915
    %v1300 = vpack.c.b16 %v932, %v916
    %v1301 = vpack.c.b16 %v933, %v917
    %v1302 = vpack.c.b16 %v934, %v918
    %v1303 = vpack.c.b16 %v935, %v919
    %v1304 = vpack.c.b16 %v936, %v920
    %v1305 = vpack.c.b16 %v937, %v921
    %v1306 = vpack.c.b16 %v938, %v922
    %v1307 = vpack.c.b16 %v939, %v923
    %v1308 = vpack.c.b16 %v956, %v940
    %v1309 = vpack.c.b16 %v957, %v941
    %v1310 = vpack.c.b16 %v958, %v942
    %v1311 = vpack.c.b16 %v959, %v943
    %v1312 = vpack.c.b16 %v960, %v944
    %v1313 = vpack.c.b16 %v961, %v945
    %v1314 = vpack.c.b16 %v962, %v946
    %v1315 = vpack.c.b16 %v963, %v947
    %v1316 = vpack.c.b16 %v964, %v948
    %v1317 = vpack.c.b16 %v965, %v949
    %v1318 = vpack.c.b16 %v966, %v950
    %v1319 = vpack.c.b16 %v967, %v951
    %v1320 = vpack.c.b16 %v968, %v952
    %v1321 = vpack.c.b16 %v969, %v953
    %v1322 = vpack.c.b16 %v970, %v954
    %v1323 = vpack.c.b16 %v971, %v955
    %v1324 = vpack.c.b16 %v988, %v972
    %v1325 = vpack.c.b16 %v989, %v973
    %v1326 = vpack.c.b16 %v990, %v974
    %v1327 = vpack.c.b16 %v991, %v975
    %v1328 = vpack.c.b16 %v992, %v976
    %v1329 = vpack.c.b16 %v993, %v977
    %v1330 = vpack.c.b16 %v994, %v978
    %v1331 = vpack.c.b16 %v995, %v979
    %v1332 = vpack.c.b16 %v996, %v980
    %v1333 = vpack.c.b16 %v997, %v981
    %v1334 = vpack.c.b16 %v998, %v982
    %v1335 = vpack.c.b16 %v999, %v983
    %v1336 = vpack.c.b16 %v1000, %v984
    %v1337 = vpack.c.b16 %v1001, %v985
    %v1338 = vpack.c.b16 %v1002, %v986
    %v1339 = vpack.c.b16 %v1003, %v987
    %v1340 = vpack.c.b16 %v1020, %v1004
    %v1341 = vpack.c.b16 %v1021, %v1005
    %v1342 = vpack.c.b16 %v1022, %v1006
    %v1343 = vpack.c.b16 %v1023, %v1007
    %v1344 = vpack.c.b16 %v1024, %v1008
    %v1345 = vpack.c.b16 %v1025, %v1009
    %v1346 = vpack.c.b16 %v1026, %v1010
    %v1347 = vpack.c.b16 %v1027, %v1011
    %v1348 = vpack.c.b16 %v1028, %v1012
    %v1349 = vpack.c.b16 %v1029, %v1013
    %v1350 = vpack.c.b16 %v1030, %v1014
    %v1351 = vpack.c.b16 %v1031, %v1015
    %v1352 = vpack.c.b16 %v1032, %v1016
    %v1353 = vpack.c.b16 %v1033, %v1017
    %v1354 = vpack.c.b16 %v1034, %v1018
    %v1355 = vpack.c.b16 %v1035, %v1019
    %v1356 = vpack.c.b16 %v1052, %v1036
    %v1357 = vpack.c.b16 %v1053, %v1037
    %v1358 = vpack.c.b16 %v1054, %v1038
    %v1359 = vpack.c.b16 %v1055, %v1039
    %v1360 = vpack.c.b16 %v1056, %v1040
    %v1361 = vpack.c.b16 %v1057, %v1041
    %v1362 = vpack.c.b16 %v1058, %v1042
    %v1363 = vpack.c.b16 %v1059, %v1043
    %v1364 = vpack.c.b16 %v1060, %v1044
    %v1365 = vpack.c.b16 %v1061, %v1045
    %v1366 = vpack.c.b16 %v1062, %v1046
    %v1367 = vpack.c.b16 %v1063, %v1047
    %v1368 = vpack.c.b16 %v1064, %v1048
    %v1369 = vpack.c.b16 %v1065, %v1049
    %v1370 = vpack.c.b16 %v1066, %v1050
    %v1371 = vpack.c.b16 %v1067, %v1051
    %v1372 = vpack.c.b16 %v1084, %v1068
    %v1373 = vpack.c.b16 %v1085, %v1069
    %v1374 = vpack.c.b16 %v1086, %v1070
    %v1375 = vpack.c.b16 %v1087, %v1071
    %v1376 = vpack.c.b16 %v1088, %v1072
    %v1377 = vpack.c.b16 %v1089, %v1073
    %v1378 = vpack.c.b16 %v1090, %v1074
    %v1379 = vpack.c.b16 %v1091, %v1075
    %v1380 = vpack.c.b16 %v1092, %v1076
    %v1381 = vpack.c.b16 %v1093, %v1077
    %v1382 = vpack.c.b16 %v1094, %v1078
    %v1383 = vpack.c.b16 %v1095, %v1079
    %v1384 = vpack.c.b16 %v1096, %v1080
    %v1385 = vpack.c.b16 %v1097, %v1081
    %v1386 = vpack.c.b16 %v1098, %v1082
    %v1387 = vpack.c.b16 %v1099, %v1083
    %v1388 = vpack.c.b16 %v1116, %v1100
    %v1389 = vpack.c.b16 %v1117, %v1101
    %v1390 = vpack.c.b16 %v1118, %v1102
    %v1391 = vpack.c.b16 %v1119, %v1103
    %v1392 = vpack.c.b16 %v1120, %v1104
    %v1393 = vpack.c.b16 %v1121, %v1105
    %v1394 = vpack.c.b16 %v1122, %v1106
    %v1395 = vpack.c.b16 %v1123, %v1107
    %v1396 = vpack.c.b16 %v1124, %v1108
    %v1397 = vpack.c.b16 %v1125, %v1109
    %v1398 = vpack.c.b16 %v1126, %v1110
    %v1399 = vpack.c.b16 %v1127, %v1111
    %v1400 = vpack.c.b16 %v1128, %v1112
    %v1401 = vpack.c.b16 %v1129, %v1113
    %v1402 = vpack.c.b16 %v1130, %v1114
    %v1403 = vpack.c.b16 %v1131, %v1115
    %v1404 = vpack.c.b16 %v1148, %v1132
    %v1405 = vpack.c.b16 %v1149, %v1133
    %v1406 = vpack.c.b16 %v1150, %v1134
    %v1407 = vpack.c.b16 %v1151, %v1135
    %v1408 = vpack.c.b16 %v1152, %v1136
    %v1409 = vpack.c.b16 %v1153, %v1137
    %v1410 = vpack.c.b16 %v1154, %v1138
    %v1411 = vpack.c.b16 %v1155, %v1139
    %v1412 = vpack.c.b16 %v1156, %v1140
    %v1413 = vpack.c.b16 %v1157, %v1141
    %v1414 = vpack.c.b16 %v1158, %v1142
    %v1415 = vpack.c.b16 %v1159, %v1143
    %v1416 = vpack.c.b16 %v1160, %v1144
    %v1417 = vpack.c.b16 %v1161, %v1145
    %v1418 = vpack.c.b16 %v1162, %v1146
    %v1419 = vpack.c.b16 %v1163, %v1147
    %1676 = vmatprep.subr.bf16.mxu0 %v1165
    %1677 = vmatpush1.bf16.msra.mxu0 %v1164
    %1678 = vmatprep.subr.bf16.mxu0 %v1181
    %1679 = vmatpush1.bf16.msra.mxu0 %v1180
    %1680 = vmatprep.subr.bf16.mxu0 %v1197
    %1681 = vmatpush1.bf16.msra.mxu0 %v1196
    %1682 = vmatprep.subr.bf16.mxu0 %v1213
    %1683 = vmatpush1.bf16.msra.mxu0 %v1212
    %1684 = vmatprep.subr.bf16.mxu0 %v1229
    %1685 = vmatpush1.bf16.msra.mxu0 %v1228
    %1686 = vmatprep.subr.bf16.mxu0 %v1245
    %1687 = vmatpush1.bf16.msra.mxu0 %v1244
    %1688 = vmatprep.subr.bf16.mxu0 %v1261
    %1689 = vmatpush1.bf16.msra.mxu0 %v1260
    %1690 = vmatprep.subr.bf16.mxu0 %v1277
    %1691 = vmatpush1.bf16.msra.mxu0 %v1276
    %1692 = vmatprep.subr.bf16.mxu0 %v1293
    %1693 = vmatpush1.bf16.msra.mxu0 %v1292
    %1694 = vmatprep.subr.bf16.mxu0 %v1309
    %1695 = vmatpush1.bf16.msra.mxu0 %v1308
    %1696 = vmatprep.subr.bf16.mxu0 %v1325
    %1697 = vmatpush1.bf16.msra.mxu0 %v1324
    %1698 = vmatprep.subr.bf16.mxu0 %v1341
    %1699 = vmatpush1.bf16.msra.mxu0 %v1340
    %1700 = vmatprep.subr.bf16.mxu0 %v1357
    %1701 = vmatpush1.bf16.msra.mxu0 %v1356
    %1702 = vmatprep.subr.bf16.mxu0 %v1373
    %1703 = vmatpush1.bf16.msra.mxu0 %v1372
    %1704 = vmatprep.subr.bf16.mxu0 %v1389
    %1705 = vmatpush1.bf16.msra.mxu0 %v1388
    %1706 = vmatprep.subr.bf16.mxu0 %v1405
    %1707 = vmatpush1.bf16.msra.mxu0 %v1404
    %1708 = vmatprep.mubr.bf16.mxu0 %v55
    %1709 = vmatmul.mubr.bf16.gmra.mrb[0].mxu0 %v54
    %v1710 = vpop.f32.mrb[0].mxu0
    %v1711 = vadd.f32 %v319, %v1710
    %v1712 = vpop.f32.mrb[0].mxu0
    %v1713 = vadd.f32 %v323, %v1712
    %v1714 = vpop.f32.mrb[0].mxu0
    %v1715 = vpop.f32.mrb[0].mxu0
    %1716 = vdwg.mxu0
    %1717 = vmatprep.subr.bf16.mxu0 %v1167
    %1718 = vmatpush1.bf16.msra.mxu0 %v1166
    %1719 = vmatprep.subr.bf16.mxu0 %v1183
    %1720 = vmatpush1.bf16.msra.mxu0 %v1182
    %1721 = vmatprep.subr.bf16.mxu0 %v1199
    %1722 = vmatpush1.bf16.msra.mxu0 %v1198
    %1723 = vmatprep.subr.bf16.mxu0 %v1215
    %1724 = vmatpush1.bf16.msra.mxu0 %v1214
    %1725 = vmatprep.subr.bf16.mxu0 %v1231
    %1726 = vmatpush1.bf16.msra.mxu0 %v1230
    %1727 = vmatprep.subr.bf16.mxu0 %v1247
    %1728 = vmatpush1.bf16.msra.mxu0 %v1246
    %1729 = vmatprep.subr.bf16.mxu0 %v1263
    %1730 = vmatpush1.bf16.msra.mxu0 %v1262
    %1731 = vmatprep.subr.bf16.mxu0 %v1279
    %1732 = vmatpush1.bf16.msra.mxu0 %v1278
    %1733 = vmatprep.subr.bf16.mxu0 %v1295
    %1734 = vmatpush1.bf16.msra.mxu0 %v1294
    %1735 = vmatprep.subr.bf16.mxu0 %v1311
    %1736 = vmatpush1.bf16.msra.mxu0 %v1310
    %1737 = vmatprep.subr.bf16.mxu0 %v1327
    %1738 = vmatpush1.bf16.msra.mxu0 %v1326
    %1739 = vmatprep.subr.bf16.mxu0 %v1343
    %1740 = vmatpush1.bf16.msra.mxu0 %v1342
    %1741 = vmatprep.subr.bf16.mxu0 %v1359
    %1742 = vmatpush1.bf16.msra.mxu0 %v1358
    %1743 = vmatprep.subr.bf16.mxu0 %v1375
    %1744 = vmatpush1.bf16.msra.mxu0 %v1374
    %1745 = vmatprep.subr.bf16.mxu0 %v1391
    %1746 = vmatpush1.bf16.msra.mxu0 %v1390
    %1747 = vmatprep.subr.bf16.mxu0 %v1407
    %1748 = vmatpush1.bf16.msra.mxu0 %v1406
    %1749 = vmatprep.mubr.bf16.mxu0 %v55
    %1750 = vmatmul.mubr.bf16.gmra.mrb[0].mxu0 %v54
    %v1751 = vpop.f32.mrb[0].mxu0
    %v1752 = vadd.f32 %v327, %v1751
    %v1753 = vpop.f32.mrb[0].mxu0
    %v1754 = vadd.f32 %v331, %v1753
    %v1755 = vpop.f32.mrb[0].mxu0
    %v1756 = vpop.f32.mrb[0].mxu0
    %1757 = vdwg.mxu0
    %1758 = vmatprep.subr.bf16.mxu0 %v1169
    %1759 = vmatpush1.bf16.msra.mxu0 %v1168
    %1760 = vmatprep.subr.bf16.mxu0 %v1185
    %1761 = vmatpush1.bf16.msra.mxu0 %v1184
    %1762 = vmatprep.subr.bf16.mxu0 %v1201
    %1763 = vmatpush1.bf16.msra.mxu0 %v1200
    %1764 = vmatprep.subr.bf16.mxu0 %v1217
    %1765 = vmatpush1.bf16.msra.mxu0 %v1216
    %1766 = vmatprep.subr.bf16.mxu0 %v1233
    %1767 = vmatpush1.bf16.msra.mxu0 %v1232
    %1768 = vmatprep.subr.bf16.mxu0 %v1249
    %1769 = vmatpush1.bf16.msra.mxu0 %v1248
    %1770 = vmatprep.subr.bf16.mxu0 %v1265
    %1771 = vmatpush1.bf16.msra.mxu0 %v1264
    %1772 = vmatprep.subr.bf16.mxu0 %v1281
    %1773 = vmatpush1.bf16.msra.mxu0 %v1280
    %1774 = vmatprep.subr.bf16.mxu0 %v1297
    %1775 = vmatpush1.bf16.msra.mxu0 %v1296
    %1776 = vmatprep.subr.bf16.mxu0 %v1313
    %1777 = vmatpush1.bf16.msra.mxu0 %v1312
    %1778 = vmatprep.subr.bf16.mxu0 %v1329
    %1779 = vmatpush1.bf16.msra.mxu0 %v1328
    %1780 = vmatprep.subr.bf16.mxu0 %v1345
    %1781 = vmatpush1.bf16.msra.mxu0 %v1344
    %1782 = vmatprep.subr.bf16.mxu0 %v1361
    %1783 = vmatpush1.bf16.msra.mxu0 %v1360
    %1784 = vmatprep.subr.bf16.mxu0 %v1377
    %1785 = vmatpush1.bf16.msra.mxu0 %v1376
    %1786 = vmatprep.subr.bf16.mxu0 %v1393
    %1787 = vmatpush1.bf16.msra.mxu0 %v1392
    %1788 = vmatprep.subr.bf16.mxu0 %v1409
    %1789 = vmatpush1.bf16.msra.mxu0 %v1408
    %1790 = vmatprep.mubr.bf16.mxu0 %v55
    %1791 = vmatmul.mubr.bf16.gmra.mrb[0].mxu0 %v54
    %v1792 = vpop.f32.mrb[0].mxu0
    %v1793 = vadd.f32 %v335, %v1792
    %v1794 = vpop.f32.mrb[0].mxu0
    %v1795 = vadd.f32 %v339, %v1794
    %v1796 = vpop.f32.mrb[0].mxu0
    %v1797 = vpop.f32.mrb[0].mxu0
    %1798 = vdwg.mxu0
    %1799 = vmatprep.subr.bf16.mxu0 %v1171
    %1800 = vmatpush1.bf16.msra.mxu0 %v1170
    %1801 = vmatprep.subr.bf16.mxu0 %v1187
    %1802 = vmatpush1.bf16.msra.mxu0 %v1186
    %1803 = vmatprep.subr.bf16.mxu0 %v1203
    %1804 = vmatpush1.bf16.msra.mxu0 %v1202
    %1805 = vmatprep.subr.bf16.mxu0 %v1219
    %1806 = vmatpush1.bf16.msra.mxu0 %v1218
    %1807 = vmatprep.subr.bf16.mxu0 %v1235
    %1808 = vmatpush1.bf16.msra.mxu0 %v1234
    %1809 = vmatprep.subr.bf16.mxu0 %v1251
    %1810 = vmatpush1.bf16.msra.mxu0 %v1250
    %1811 = vmatprep.subr.bf16.mxu0 %v1267
    %1812 = vmatpush1.bf16.msra.mxu0 %v1266
    %1813 = vmatprep.subr.bf16.mxu0 %v1283
    %1814 = vmatpush1.bf16.msra.mxu0 %v1282
    %1815 = vmatprep.subr.bf16.mxu0 %v1299
    %1816 = vmatpush1.bf16.msra.mxu0 %v1298
    %1817 = vmatprep.subr.bf16.mxu0 %v1315
    %1818 = vmatpush1.bf16.msra.mxu0 %v1314
    %1819 = vmatprep.subr.bf16.mxu0 %v1331
    %1820 = vmatpush1.bf16.msra.mxu0 %v1330
    %1821 = vmatprep.subr.bf16.mxu0 %v1347
    %1822 = vmatpush1.bf16.msra.mxu0 %v1346
    %1823 = vmatprep.subr.bf16.mxu0 %v1363
    %1824 = vmatpush1.bf16.msra.mxu0 %v1362
    %1825 = vmatprep.subr.bf16.mxu0 %v1379
    %1826 = vmatpush1.bf16.msra.mxu0 %v1378
    %1827 = vmatprep.subr.bf16.mxu0 %v1395
    %1828 = vmatpush1.bf16.msra.mxu0 %v1394
    %1829 = vmatprep.subr.bf16.mxu0 %v1411
    %1830 = vmatpush1.bf16.msra.mxu0 %v1410
    %1831 = vmatprep.mubr.bf16.mxu0 %v55
    %1832 = vmatmul.mubr.bf16.gmra.mrb[0].mxu0 %v54
    %v1833 = vpop.f32.mrb[0].mxu0
    %v1834 = vadd.f32 %v343, %v1833
    %v1835 = vpop.f32.mrb[0].mxu0
    %v1836 = vadd.f32 %v347, %v1835
    %v1837 = vpop.f32.mrb[0].mxu0
    %v1838 = vpop.f32.mrb[0].mxu0
    %1839 = vdwg.mxu0
    %1840 = vmatprep.subr.bf16.mxu0 %v1173
    %1841 = vmatpush1.bf16.msra.mxu0 %v1172
    %1842 = vmatprep.subr.bf16.mxu0 %v1189
    %1843 = vmatpush1.bf16.msra.mxu0 %v1188
    %1844 = vmatprep.subr.bf16.mxu0 %v1205
    %1845 = vmatpush1.bf16.msra.mxu0 %v1204
    %1846 = vmatprep.subr.bf16.mxu0 %v1221
    %1847 = vmatpush1.bf16.msra.mxu0 %v1220
    %1848 = vmatprep.subr.bf16.mxu0 %v1237
    %1849 = vmatpush1.bf16.msra.mxu0 %v1236
    %1850 = vmatprep.subr.bf16.mxu0 %v1253
    %1851 = vmatpush1.bf16.msra.mxu0 %v1252
    %1852 = vmatprep.subr.bf16.mxu0 %v1269
    %1853 = vmatpush1.bf16.msra.mxu0 %v1268
    %1854 = vmatprep.subr.bf16.mxu0 %v1285
    %1855 = vmatpush1.bf16.msra.mxu0 %v1284
    %1856 = vmatprep.subr.bf16.mxu0 %v1301
    %1857 = vmatpush1.bf16.msra.mxu0 %v1300
    %1858 = vmatprep.subr.bf16.mxu0 %v1317
    %1859 = vmatpush1.bf16.msra.mxu0 %v1316
    %1860 = vmatprep.subr.bf16.mxu0 %v1333
    %1861 = vmatpush1.bf16.msra.mxu0 %v1332
    %1862 = vmatprep.subr.bf16.mxu0 %v1349
    %1863 = vmatpush1.bf16.msra.mxu0 %v1348
    %1864 = vmatprep.subr.bf16.mxu0 %v1365
    %1865 = vmatpush1.bf16.msra.mxu0 %v1364
    %1866 = vmatprep.subr.bf16.mxu0 %v1381
    %1867 = vmatpush1.bf16.msra.mxu0 %v1380
    %1868 = vmatprep.subr.bf16.mxu0 %v1397
    %1869 = vmatpush1.bf16.msra.mxu0 %v1396
    %1870 = vmatprep.subr.bf16.mxu0 %v1413
    %1871 = vmatpush1.bf16.msra.mxu0 %v1412
    %1872 = vmatprep.mubr.bf16.mxu0 %v55
    %1873 = vmatmul.mubr.bf16.gmra.mrb[0].mxu0 %v54
    %v1874 = vpop.f32.mrb[0].mxu0
    %v1875 = vadd.f32 %v351, %v1874
    %v1876 = vpop.f32.mrb[0].mxu0
    %v1877 = vadd.f32 %v355, %v1876
    %v1878 = vpop.f32.mrb[0].mxu0
    %v1879 = vpop.f32.mrb[0].mxu0
    %1880 = vdwg.mxu0
    %1881 = vmatprep.subr.bf16.mxu0 %v1175
    %1882 = vmatpush1.bf16.msra.mxu0 %v1174
    %1883 = vmatprep.subr.bf16.mxu0 %v1191
    %1884 = vmatpush1.bf16.msra.mxu0 %v1190
    %1885 = vmatprep.subr.bf16.mxu0 %v1207
    %1886 = vmatpush1.bf16.msra.mxu0 %v1206
    %1887 = vmatprep.subr.bf16.mxu0 %v1223
    %1888 = vmatpush1.bf16.msra.mxu0 %v1222
    %1889 = vmatprep.subr.bf16.mxu0 %v1239
    %1890 = vmatpush1.bf16.msra.mxu0 %v1238
    %1891 = vmatprep.subr.bf16.mxu0 %v1255
    %1892 = vmatpush1.bf16.msra.mxu0 %v1254
    %1893 = vmatprep.subr.bf16.mxu0 %v1271
    %1894 = vmatpush1.bf16.msra.mxu0 %v1270
    %1895 = vmatprep.subr.bf16.mxu0 %v1287
    %1896 = vmatpush1.bf16.msra.mxu0 %v1286
    %1897 = vmatprep.subr.bf16.mxu0 %v1303
    %1898 = vmatpush1.bf16.msra.mxu0 %v1302
    %1899 = vmatprep.subr.bf16.mxu0 %v1319
    %1900 = vmatpush1.bf16.msra.mxu0 %v1318
    %1901 = vmatprep.subr.bf16.mxu0 %v1335
    %1902 = vmatpush1.bf16.msra.mxu0 %v1334
    %1903 = vmatprep.subr.bf16.mxu0 %v1351
    %1904 = vmatpush1.bf16.msra.mxu0 %v1350
    %1905 = vmatprep.subr.bf16.mxu0 %v1367
    %1906 = vmatpush1.bf16.msra.mxu0 %v1366
    %1907 = vmatprep.subr.bf16.mxu0 %v1383
    %1908 = vmatpush1.bf16.msra.mxu0 %v1382
    %1909 = vmatprep.subr.bf16.mxu0 %v1399
    %1910 = vmatpush1.bf16.msra.mxu0 %v1398
    %1911 = vmatprep.subr.bf16.mxu0 %v1415
    %1912 = vmatpush1.bf16.msra.mxu0 %v1414
    %1913 = vmatprep.mubr.bf16.mxu0 %v55
    %1914 = vmatmul.mubr.bf16.gmra.mrb[0].mxu0 %v54
    %v1915 = vpop.f32.mrb[0].mxu0
    %v1916 = vadd.f32 %v359, %v1915
    %v1917 = vpop.f32.mrb[0].mxu0
    %v1918 = vadd.f32 %v363, %v1917
    %v1919 = vpop.f32.mrb[0].mxu0
    %v1920 = vpop.f32.mrb[0].mxu0
    %1921 = vdwg.mxu0
    %1922 = vmatprep.subr.bf16.mxu0 %v1177
    %1923 = vmatpush1.bf16.msra.mxu0 %v1176
    %1924 = vmatprep.subr.bf16.mxu0 %v1193
    %1925 = vmatpush1.bf16.msra.mxu0 %v1192
    %1926 = vmatprep.subr.bf16.mxu0 %v1209
    %1927 = vmatpush1.bf16.msra.mxu0 %v1208
    %1928 = vmatprep.subr.bf16.mxu0 %v1225
    %1929 = vmatpush1.bf16.msra.mxu0 %v1224
    %1930 = vmatprep.subr.bf16.mxu0 %v1241
    %1931 = vmatpush1.bf16.msra.mxu0 %v1240
    %1932 = vmatprep.subr.bf16.mxu0 %v1257
    %1933 = vmatpush1.bf16.msra.mxu0 %v1256
    %1934 = vmatprep.subr.bf16.mxu0 %v1273
    %1935 = vmatpush1.bf16.msra.mxu0 %v1272
    %1936 = vmatprep.subr.bf16.mxu0 %v1289
    %1937 = vmatpush1.bf16.msra.mxu0 %v1288
    %1938 = vmatprep.subr.bf16.mxu0 %v1305
    %1939 = vmatpush1.bf16.msra.mxu0 %v1304
    %1940 = vmatprep.subr.bf16.mxu0 %v1321
    %1941 = vmatpush1.bf16.msra.mxu0 %v1320
    %1942 = vmatprep.subr.bf16.mxu0 %v1337
    %1943 = vmatpush1.bf16.msra.mxu0 %v1336
    %1944 = vmatprep.subr.bf16.mxu0 %v1353
    %1945 = vmatpush1.bf16.msra.mxu0 %v1352
    %1946 = vmatprep.subr.bf16.mxu0 %v1369
    %1947 = vmatpush1.bf16.msra.mxu0 %v1368
    %1948 = vmatprep.subr.bf16.mxu0 %v1385
    %1949 = vmatpush1.bf16.msra.mxu0 %v1384
    %1950 = vmatprep.subr.bf16.mxu0 %v1401
    %1951 = vmatpush1.bf16.msra.mxu0 %v1400
    %1952 = vmatprep.subr.bf16.mxu0 %v1417
    %1953 = vmatpush1.bf16.msra.mxu0 %v1416
    %1954 = vmatprep.mubr.bf16.mxu0 %v55
    %1955 = vmatmul.mubr.bf16.gmra.mrb[0].mxu0 %v54
    %v1956 = vpop.f32.mrb[0].mxu0
    %v1957 = vadd.f32 %v367, %v1956
    %v1958 = vpop.f32.mrb[0].mxu0
    %v1959 = vadd.f32 %v371, %v1958
    %v1960 = vpop.f32.mrb[0].mxu0
    %v1961 = vpop.f32.mrb[0].mxu0
    %1962 = vdwg.mxu0
    %1963 = vmatprep.subr.bf16.mxu0 %v1179
    %1964 = vmatpush1.bf16.msra.mxu0 %v1178
    %1965 = vmatprep.subr.bf16.mxu0 %v1195
    %1966 = vmatpush1.bf16.msra.mxu0 %v1194
    %1967 = vmatprep.subr.bf16.mxu0 %v1211
    %1968 = vmatpush1.bf16.msra.mxu0 %v1210
    %1969 = vmatprep.subr.bf16.mxu0 %v1227
    %1970 = vmatpush1.bf16.msra.mxu0 %v1226
    %1971 = vmatprep.subr.bf16.mxu0 %v1243
    %1972 = vmatpush1.bf16.msra.mxu0 %v1242
    %1973 = vmatprep.subr.bf16.mxu0 %v1259
    %1974 = vmatpush1.bf16.msra.mxu0 %v1258
    %1975 = vmatprep.subr.bf16.mxu0 %v1275
    %1976 = vmatpush1.bf16.msra.mxu0 %v1274
    %1977 = vmatprep.subr.bf16.mxu0 %v1291
    %1978 = vmatpush1.bf16.msra.mxu0 %v1290
    %1979 = vmatprep.subr.bf16.mxu0 %v1307
    %1980 = vmatpush1.bf16.msra.mxu0 %v1306
    %1981 = vmatprep.subr.bf16.mxu0 %v1323
    %1982 = vmatpush1.bf16.msra.mxu0 %v1322
    %1983 = vmatprep.subr.bf16.mxu0 %v1339
    %1984 = vmatpush1.bf16.msra.mxu0 %v1338
    %1985 = vmatprep.subr.bf16.mxu0 %v1355
    %1986 = vmatpush1.bf16.msra.mxu0 %v1354
    %1987 = vmatprep.subr.bf16.mxu0 %v1371
    %1988 = vmatpush1.bf16.msra.mxu0 %v1370
    %1989 = vmatprep.subr.bf16.mxu0 %v1387
    %1990 = vmatpush1.bf16.msra.mxu0 %v1386
    %1991 = vmatprep.subr.bf16.mxu0 %v1403
    %1992 = vmatpush1.bf16.msra.mxu0 %v1402
    %1993 = vmatprep.subr.bf16.mxu0 %v1419
    %1994 = vmatpush1.bf16.msra.mxu0 %v1418
    %1995 = vmatprep.mubr.bf16.mxu0 %v55
    %1996 = vmatmul.mubr.bf16.gmra.mrb[0].mxu0 %v54
    %v1997 = vpop.f32.mrb[0].mxu0
    %v1998 = vadd.f32 %v375, %v1997
    %v1999 = vpop.f32.mrb[0].mxu0
    %v2000 = vadd.f32 %v379, %v1999
    %v2001 = vpop.f32.mrb[0].mxu0
    %v2002 = vpop.f32.mrb[0].mxu0
    %2003 = vdwg.mxu0
    %v2004 = vmax.f32 %v1711, 0.0
    %v2005 = vmax.f32 %v1713, 0.0
    %v2006 = vmax.f32 %v1752, 0.0
    %v2007 = vmax.f32 %v1754, 0.0
    %v2008 = vmax.f32 %v1793, 0.0
    %v2009 = vmax.f32 %v1795, 0.0
    %v2010 = vmax.f32 %v1834, 0.0
    %v2011 = vmax.f32 %v1836, 0.0
    %v2012 = vmax.f32 %v1875, 0.0
    %v2013 = vmax.f32 %v1877, 0.0
    %v2014 = vmax.f32 %v1916, 0.0
    %v2015 = vmax.f32 %v1918, 0.0
    %v2016 = vmax.f32 %v1957, 0.0
    %v2017 = vmax.f32 %v1959, 0.0
    %v2018 = vmax.f32 %v1998, 0.0
    %v2019 = vmax.f32 %v2000, 0.0
    %2020 = vst [vmem:[#allocation8] sm:$0xff] %v2004
    %2021 = vst [vmem:[#allocation8 + $0x8] sm:$0xff] %v2005
    %2022 = vst [vmem:[#allocation8 + $0x10] sm:$0xff] %v2006
    %2023 = vst [vmem:[#allocation8 + $0x18] sm:$0xff] %v2007
    %2024 = vst [vmem:[#allocation8 + $0x20] sm:$0xff] %v2008
    %2025 = vst [vmem:[#allocation8 + $0x28] sm:$0xff] %v2009
    %2026 = vst [vmem:[#allocation8 + $0x30] sm:$0xff] %v2010
    %2027 = vst [vmem:[#allocation8 + $0x38] sm:$0xff] %v2011
    %2028 = vst [vmem:[#allocation8 + $0x40] sm:$0xff] %v2012
    %2029 = vst [vmem:[#allocation8 + $0x48] sm:$0xff] %v2013
    %2030 = vst [vmem:[#allocation8 + $0x50] sm:$0xff] %v2014
    %2031 = vst [vmem:[#allocation8 + $0x58] sm:$0xff] %v2015
    %2032 = vst [vmem:[#allocation8 + $0x60] sm:$0xff] %v2016
    %2033 = vst [vmem:[#allocation8 + $0x68] sm:$0xff] %v2017
    %2034 = vst [vmem:[#allocation8 + $0x70] sm:$0xff] %v2018
    %2035 = vst [vmem:[#allocation8 + $0x78] sm:$0xff] %v2019
    // Predicated region
    $region26: #{tpu_custom_call.1} parent=1 // pred_check
      _
    $region27: #{tpu_custom_call.1} parent=1 // pred_check_branch
      %2037 = sbr.rel (0) target = $region29
    $region28: #{tpu_custom_call.1} parent=1 // pred_region
      %s2039 = ssub.s32 2048, 2048
      %2040 = vsyncadd [#allocation4], %s2039
      %s2042 = sshll.u32 [#allocation8], 4
      %s2043 = int_to_ptr.vmem [resolvable:$true] %s2042
      %2045 = dma.vmem_to_hbm [thread:$0]  %s2043, 2048, %s3, [#allocation4]
    $region29: #{tpu_custom_call.1} parent=1 // pred_fallthru
      _
    // Predicated region
    $region30: #{tpu_custom_call.1} parent=1 // pred_check
      _
    $region31: #{tpu_custom_call.1} parent=1 // pred_check_branch
      %2047 = sbr.rel (0) target = $region33
    $region32: #{tpu_custom_call.1} parent=1 // pred_region
      %2048 = dma.done [#allocation4], 2048
    $region33: #{tpu_custom_call.1} parent=1 // pred_fallthru
      _
    %2049 = vsyncpa [#allocation3], 1
    %2050 = vsyncpa [#allocation6], 1
    %2051 = vsyncpa [#allocation4], 1

</llo_original>
